<compile_context>
chip_gen: v7x
topology: tpu7x:2x2x1
jax: 0.10.0
libtpu: 0.0.40
codegen_flags: <defaults>
</compile_context>

<pallas_src>
import jax
import jax.numpy as jnp
from jax import lax
from jax.experimental import pallas as pl
from jax.experimental.pallas import tpu as pltpu
import numpy as np


def _round_up(x, m):
    return (x + m - 1) // m * m


def _pad_gate_cols(a, H, Hp):
    """Pad each of the 4 gate blocks along the last axis from H to Hp with 0."""
    if Hp == H:
        return a
    parts = jnp.split(a, 4, axis=-1)
    pad = [(0, 0)] * (a.ndim - 1) + [(0, Hp - H)]
    return jnp.concatenate([jnp.pad(p, pad) for p in parts], axis=-1)


def _scale_g_cols(a, Hp):
    """Scale the g-gate block [2Hp:3Hp) of the last axis by 2 (exact, so that
    tanh(x) = 2*sigmoid(2x) - 1 recovers the tanh gate from one sigmoid)."""
    scale = jnp.concatenate([jnp.ones((2 * Hp,), a.dtype),
                             jnp.full((Hp,), 2.0, a.dtype),
                             jnp.ones((Hp,), a.dtype)])
    return a * scale


def lstm_kernel(g0_ref,                          # [Tc*Bp, 4Hp] f32  (precomputed x@Wih0 + b0)
                whh0_ref, wih1_ref, whh1_ref,    # [Hp, 4Hp] bf16
                b1_ref,                          # [1, 4Hp]  f32
                wfc_ref, bfc_ref,                # [1, Hp], [1, 1] f32
                out_ref,                         # [Bp, 1]   f32
                h0_ref, c0_ref, h1_ref, c1_ref,  # [Bp, Hp]  f32 scratch (persist across chunks)
                h0seq_ref,                       # [Tc*Bp, Hp]  bf16 scratch (layer-0 outputs)
                g1_ref):                         # [Tc*Bp, 4Hp] f32  scratch (layer-1 pre-gates)
    Bp, Hp = h0_ref.shape
    Tc = g0_ref.shape[0] // Bp
    unroll = max(1, min(Tc, 8))          # capped unroll: keeps state in vregs
    chunk = pl.program_id(0)

    # Zero initial state (PyTorch default) and the output buffer once.
    @pl.when(chunk == 0)
    def _():
        h0_ref[...] = jnp.zeros_like(h0_ref)
        c0_ref[...] = jnp.zeros_like(c0_ref)
        h1_ref[...] = jnp.zeros_like(h1_ref)
        c1_ref[...] = jnp.zeros_like(c1_ref)
        out_ref[...] = jnp.zeros_like(out_ref)

    # Hoist weight / bias loads out of the time loops.
    whh0 = whh0_ref[...]
    whh1 = whh1_ref[...]
    b1 = b1_ref[...]

    def activate(gates):
        # PyTorch gate order [i | f | g | o]; g columns were pre-scaled by 2
        # so one full-width sigmoid + (2s - 1) recovers tanh for the g gate.
        s = jax.nn.sigmoid(gates)
        i = s[:, 0:Hp]
        f = s[:, Hp:2 * Hp]
        g = 2.0 * s[:, 2 * Hp:3 * Hp] - 1.0
        o = s[:, 3 * Hp:4 * Hp]
        return i, f, g, o

    # ---- Pass 1: layer-0 recurrence (only h0 @ whh0 on the serial path);
    #      record every h0(t) for the whole chunk in bf16 scratch.
    def step0(t, carry):
        h, c = carry
        row = pl.multiple_of(t * Bp, Bp)
        gates = g0_ref[pl.ds(row, Bp), :] + jnp.dot(
            h.astype(jnp.bfloat16), whh0, preferred_element_type=jnp.float32)
        i, f, g, o = activate(gates)
        c = f * c + i * g
        h = o * jnp.tanh(c)
        h0seq_ref[pl.ds(row, Bp), :] = h.astype(jnp.bfloat16)
        return h, c

    h0, c0 = lax.fori_loop(0, Tc, step0, (h0_ref[...], c0_ref[...]),
                           unroll=unroll)
    h0_ref[...] = h0
    c0_ref[...] = c0

    # ---- Pass 2: layer-1 input projection for the WHOLE chunk as one large
    #      MXU matmul (fills the MXU; bias add done once per chunk).
    g1_ref[...] = jnp.dot(h0seq_ref[...], wih1_ref[...],
                          preferred_element_type=jnp.float32) + b1

    # ---- Pass 3: layer-1 recurrence (only h1 @ whh1 on the serial path).
    def step1(t, carry):
        h, c = carry
        row = pl.multiple_of(t * Bp, Bp)
        gates = g1_ref[pl.ds(row, Bp), :] + jnp.dot(
            h.astype(jnp.bfloat16), whh1, preferred_element_type=jnp.float32)
        i, f, g, o = activate(gates)
        c = f * c + i * g
        h = o * jnp.tanh(c)
        return h, c

    h1, c1 = lax.fori_loop(0, Tc, step1, (h1_ref[...], c1_ref[...]),
                           unroll=unroll)
    h1_ref[...] = h1
    c1_ref[...] = c1

    @pl.when(chunk == pl.num_programs(0) - 1)
    def _():
        # fc_out on the last timestep's top-layer hidden state:
        # VPU multiply + lane reduction instead of an N=1 MXU matmul.
        out_ref[...] = (jnp.sum(h1 * wfc_ref[...], axis=-1, keepdims=True)
                        + bfc_ref[...])
    # TODO(synk): advanced — pin whh0/whh1 in the MXU with
    # pltpu.matmul_push_rhs once per chunk and drive the per-step recurrent
    # matmuls with matmul_acc_lhs/matmul_pop to trim serial MXU latency.


def _auto_t_chunk(T, Bp, Hp, budget_bytes):
    """Largest divisor of T whose per-chunk VMEM footprint fits the budget."""
    best = 1
    for tc in range(1, T + 1):
        if T % tc:
            continue
        rows = tc * Bp
        need = (2 * rows * 4 * Hp * 4     # streamed g0 chunk, double-buffered, f32
                + rows * 4 * Hp * 4       # g1 scratch, f32
                + rows * Hp * 2)          # h0 chunk scratch, bf16
        if need <= budget_bytes:
            best = tc
    return best


def lstm_forward(x, params, d_feat, t_chunk=None):
    """x: [B, T, F] float32. Returns [B] (fc_out(out[:, -1, :]).squeeze())."""
    B, T, _ = x.shape
    H = params["whh0"].shape[1]
    Hp = _round_up(H, 128)     # lane-aligned hidden (whole-vreg gate slices)
    Bp = _round_up(B, 16)      # sublane-aligned batch (bf16 packing = 16 rows)
    f32, bf16 = jnp.float32, jnp.bfloat16

    # Generation-aware VMEM sizing (conservative 64 MiB fallback covers v7x).
    try:
        vmem_cap = int(pltpu.get_tpu_info().vmem_capacity_bytes)
    except Exception:
        vmem_cap = 64 << 20
    vmem_limit = int(min(vmem_cap * 3 // 4, 100 << 20))
    chunk_budget = vmem_limit * 2 // 3

    if t_chunk is None or t_chunk <= 0 or t_chunk > T or T % t_chunk != 0:
        t_chunk = _auto_t_chunk(T, Bp, Hp, chunk_budget)
    num_chunks = T // t_chunk

    # --- weight prep (glue): transpose to [in, 4H], zero-pad each gate block
    # H->Hp, zero-pad recurrent input rows H->Hp, pre-scale g columns by 2,
    # cast the MXU (recurrent / layer-1 input) weights to bf16.
    def prep_w(w, in_pad):
        wt = _pad_gate_cols(w.astype(f32).T, H, Hp)
        if in_pad:
            wt = jnp.pad(wt, ((0, in_pad), (0, 0)))
        return _scale_g_cols(wt, Hp)

    wih0 = prep_w(params["wih0"], 0)                       # [D, 4Hp]  f32 (used outside kernel)
    whh0 = prep_w(params["whh0"], Hp - H).astype(bf16)     # [Hp, 4Hp] bf16
    wih1 = prep_w(params["wih1"], Hp - H).astype(bf16)     # [Hp, 4Hp] bf16
    whh1 = prep_w(params["whh1"], Hp - H).astype(bf16)     # [Hp, 4Hp] bf16
    b0 = _scale_g_cols(_pad_gate_cols(
        (params["bih0"] + params["bhh0"]).astype(f32), H, Hp), Hp)   # [4Hp]
    b1 = _scale_g_cols(_pad_gate_cols(
        (params["bih1"] + params["bhh1"]).astype(f32), H, Hp), Hp)[None, :]  # [1,4Hp]
    wfc = jnp.pad(params["wfc"].astype(f32), ((0, 0), (0, Hp - H)))   # [1, Hp]
    bfc = params["bfc"].astype(f32)[None, :]                          # [1, 1]

    # --- layer-0 input projection lifted out of the kernel: one big XLA MXU
    # matmul, streamed per-chunk into the kernel (overlaps with the previous
    # chunk's recurrence via the Pallas double-buffered pipeline).
    src = x[:, :, :d_feat].astype(f32)                     # [B, T, D]
    src = jnp.pad(src, ((0, Bp - B), (0, 0), (0, 0)))      # [Bp, T, D]
    src_tm = jnp.transpose(src, (1, 0, 2)).reshape(T * Bp, d_feat)
    g0_all = src_tm @ wih0 + b0[None, :]                   # [T*Bp, 4Hp] f32

    weights = (whh0, wih1, whh1, b1, wfc, bfc)
    in_specs = [pl.BlockSpec((t_chunk * Bp, 4 * Hp), lambda c: (c, 0))]
    in_specs += [pl.BlockSpec(w.shape, lambda c: (0, 0)) for w in weights]
    # TODO(synk): on v7x, single-buffer the grid-invariant weight inputs and
    # stream g0 in bf16 to roughly halve the VMEM footprint; also add a
    # leading "parallel" batch axis to use the second TensorCore.

    grid_spec = pltpu.PrefetchScalarGridSpec(
        num_scalar_prefetch=0,
        grid=(num_chunks,),
        in_specs=in_specs,
        out_specs=pl.BlockSpec((Bp, 1), lambda c: (0, 0)),
        scratch_shapes=[pltpu.VMEM((Bp, Hp), f32)] * 4
                       + [pltpu.VMEM((t_chunk * Bp, Hp), bf16),
                          pltpu.VMEM((t_chunk * Bp, 4 * Hp), f32)],
    )

    out = pl.pallas_call(
        lstm_kernel,
        out_shape=jax.ShapeDtypeStruct((Bp, 1), f32),
        grid_spec=grid_spec,
        compiler_params=pltpu.CompilerParams(
            dimension_semantics=("arbitrary",),   # sequential state carry over T
            vmem_limit_bytes=vmem_limit),
    )(g0_all, *weights)
    return out[:B, 0]                              # squeeze -> [B]


def lstm_reference(x, params, d_feat):
    """Pure-JAX f32 reference matching torch.nn.LSTM semantics."""
    src = jnp.transpose(x[:, :, :d_feat], (1, 0, 2)).astype(jnp.float32)
    B = src.shape[1]
    H = params["whh0"].shape[1]

    def run_layer(xs, wih, whh, bih, bhh):
        def step(carry, x_t):
            h, c = carry
            gates = x_t @ wih.T + h @ whh.T + bih + bhh
            i, f, g, o = jnp.split(gates, 4, axis=-1)
            i, f, o = jax.nn.sigmoid(i), jax.nn.sigmoid(f), jax.nn.sigmoid(o)
            g = jnp.tanh(g)
            c = f * c + i * g
            h = o * jnp.tanh(c)
            return (h, c), h
        init = (jnp.zeros((B, H), jnp.float32), jnp.zeros((B, H), jnp.float32))
        _, hs = lax.scan(step, init, xs)
        return hs

    hs0 = run_layer(src, params["wih0"], params["whh0"],
                    params["bih0"], params["bhh0"])
    hs1 = run_layer(hs0, params["wih1"], params["whh1"],
                    params["bih1"], params["bhh1"])
    out = hs1[-1] @ params["wfc"].T + params["bfc"]
    return out[:, 0]


def init_params(key, d_feat, hidden):
    """Deterministic PyTorch-style init: U(-1/sqrt(H), 1/sqrt(H))."""
    k = 1.0 / np.sqrt(hidden)
    names_shapes = [
        ("wih0", (4 * hidden, d_feat)), ("whh0", (4 * hidden, hidden)),
        ("bih0", (4 * hidden,)), ("bhh0", (4 * hidden,)),
        ("wih1", (4 * hidden, hidden)), ("whh1", (4 * hidden, hidden)),
        ("bih1", (4 * hidden,)), ("bhh1", (4 * hidden,)),
        ("wfc", (1, hidden)), ("bfc", (1,)),
    ]
    params = {}
    for name, shape in names_shapes:
        key, sub = jax.random.split(key)
        params[name] = jax.random.uniform(sub, shape, jnp.float32, -k, k)
    return params


if __name__ == "__main__":
    # Small shapes consistent with the module's forward:
    # x: [B, T, F_total]; src = x[:, :, :d_feat]
    B, T = 2, 8
    d_feat = 16                 # gate_input_start_index
    F_total = 24                # slice beyond d_feat is unused in forward
    hidden = 32

    key = jax.random.PRNGKey(0)
    key, kx = jax.random.split(key)
    x = jax.random.normal(kx, (B, T, F_total), jnp.float32)

    params = init_params(key, d_feat, hidden)

    out = lstm_forward(x, params, d_feat, t_chunk=4)   # grid of 2 T-chunks
    out = jax.block_until_ready(out)

    ref = jax.block_until_ready(lstm_reference(x, params, d_feat))
    assert out.shape == (B,), out.shape
    # bf16 MXU operands (f32 accumulation / activations) vs. pure-f32 ref.
    np.testing.assert_allclose(np.asarray(out), np.asarray(ref),
                               rtol=2e-2, atol=2e-2)
    print("KERNEL_OK")
</pallas_src>

<mosaic_0001>
module attributes {stable_mosaic.version = 11 : i64} {
  func.func @lstm_kernel(%arg0: i32, %arg1: memref<64x512xf32, #tpu.memory_space<vmem>>, %arg2: memref<128x512xbf16, #tpu.memory_space<vmem>>, %arg3: memref<128x512xbf16, #tpu.memory_space<vmem>>, %arg4: memref<128x512xbf16, #tpu.memory_space<vmem>>, %arg5: memref<1x512xf32, #tpu.memory_space<vmem>>, %arg6: memref<1x128xf32, #tpu.memory_space<vmem>>, %arg7: memref<1x1xf32, #tpu.memory_space<vmem>>, %arg8: memref<16x1xf32, #tpu.memory_space<vmem>>, %arg9: memref<16x128xf32, #tpu.memory_space<vmem>>, %arg10: memref<16x128xf32, #tpu.memory_space<vmem>>, %arg11: memref<16x128xf32, #tpu.memory_space<vmem>>, %arg12: memref<16x128xf32, #tpu.memory_space<vmem>>, %arg13: memref<64x128xbf16, #tpu.memory_space<vmem>>, %arg14: memref<64x512xf32, #tpu.memory_space<vmem>>) attributes {dimension_semantics = [#tpu.dimension_semantics<arbitrary>], iteration_bounds = array<i64: 2>, scalar_prefetch = 0 : i64, scratch_operands = 6 : i64, tpu.core_type = #tpu.core_type<tc>, window_params = [{transform_indices = @transform_0, window_bounds = array<i64: 64, 512>}, {pipeline_mode = #tpu.pipeline_mode<synchronous>, transform_indices = @transform_1, window_bounds = array<i64: 128, 512>}, {pipeline_mode = #tpu.pipeline_mode<synchronous>, transform_indices = @transform_2, window_bounds = array<i64: 128, 512>}, {pipeline_mode = #tpu.pipeline_mode<synchronous>, transform_indices = @transform_3, window_bounds = array<i64: 128, 512>}, {pipeline_mode = #tpu.pipeline_mode<synchronous>, transform_indices = @transform_4, window_bounds = array<i64: 1, 512>}, {pipeline_mode = #tpu.pipeline_mode<synchronous>, transform_indices = @transform_5, window_bounds = array<i64: 1, 128>}, {pipeline_mode = #tpu.pipeline_mode<synchronous>, transform_indices = @transform_6, window_bounds = array<i64: 1, 1>}, {pipeline_mode = #tpu.pipeline_mode<synchronous>, transform_indices = @transform_7, window_bounds = array<i64: 16, 1>}]} {
    %c0_i32 = arith.constant 0 : i32
    %0 = arith.cmpi eq, %arg0, %c0_i32 : i32
    %1 = arith.extui %0 : i1 to i32
    %c0_i32_0 = arith.constant 0 : i32
    %2 = arith.cmpi ne, %1, %c0_i32_0 : i32
    scf.if %2 {
      %cst_87 = arith.constant 0.000000e+00 : f32
      %235 = vector.broadcast %cst_87 : f32 to vector<16x128xf32>
      %c0_88 = arith.constant 0 : index
      %c0_89 = arith.constant 0 : index
      %236 = vector.load %arg9[%c0_88, %c0_89] : memref<16x128xf32, #tpu.memory_space<vmem>>, vector<16x128xf32>
      tpu.vector_store %arg9[%c0_88, %c0_89], %235 {strides = array<i32>} : memref<16x128xf32, #tpu.memory_space<vmem>>, vector<16x128xf32>,
      %cst_90 = arith.constant 0.000000e+00 : f32
      %237 = vector.broadcast %cst_90 : f32 to vector<16x128xf32>
      %c0_91 = arith.constant 0 : index
      %c0_92 = arith.constant 0 : index
      %238 = vector.load %arg10[%c0_91, %c0_92] : memref<16x128xf32, #tpu.memory_space<vmem>>, vector<16x128xf32>
      tpu.vector_store %arg10[%c0_91, %c0_92], %237 {strides = array<i32>} : memref<16x128xf32, #tpu.memory_space<vmem>>, vector<16x128xf32>,
      %cst_93 = arith.constant 0.000000e+00 : f32
      %239 = vector.broadcast %cst_93 : f32 to vector<16x128xf32>
      %c0_94 = arith.constant 0 : index
      %c0_95 = arith.constant 0 : index
      %240 = vector.load %arg11[%c0_94, %c0_95] : memref<16x128xf32, #tpu.memory_space<vmem>>, vector<16x128xf32>
      tpu.vector_store %arg11[%c0_94, %c0_95], %239 {strides = array<i32>} : memref<16x128xf32, #tpu.memory_space<vmem>>, vector<16x128xf32>,
      %cst_96 = arith.constant 0.000000e+00 : f32
      %241 = vector.broadcast %cst_96 : f32 to vector<16x128xf32>
      %c0_97 = arith.constant 0 : index
      %c0_98 = arith.constant 0 : index
      %242 = vector.load %arg12[%c0_97, %c0_98] : memref<16x128xf32, #tpu.memory_space<vmem>>, vector<16x128xf32>
      tpu.vector_store %arg12[%c0_97, %c0_98], %241 {strides = array<i32>} : memref<16x128xf32, #tpu.memory_space<vmem>>, vector<16x128xf32>,
      %cst_99 = arith.constant 0.000000e+00 : f32
      %243 = vector.broadcast %cst_99 : f32 to vector<16x1xf32>
      %c0_100 = arith.constant 0 : index
      %c0_101 = arith.constant 0 : index
      %244 = vector.load %arg8[%c0_100, %c0_101] : memref<16x1xf32, #tpu.memory_space<vmem>>, vector<16x1xf32>
      tpu.vector_store %arg8[%c0_100, %c0_101], %243 {strides = array<i32>} : memref<16x1xf32, #tpu.memory_space<vmem>>, vector<16x1xf32>,
    } else {
    }
    %c0 = arith.constant 0 : index
    %c0_1 = arith.constant 0 : index
    %3 = vector.load %arg2[%c0, %c0_1] : memref<128x512xbf16, #tpu.memory_space<vmem>>, vector<128x512xbf16>
    %c0_2 = arith.constant 0 : index
    %c0_3 = arith.constant 0 : index
    %4 = vector.load %arg4[%c0_2, %c0_3] : memref<128x512xbf16, #tpu.memory_space<vmem>>, vector<128x512xbf16>
    %c0_4 = arith.constant 0 : index
    %c0_5 = arith.constant 0 : index
    %5 = vector.load %arg5[%c0_4, %c0_5] : memref<1x512xf32, #tpu.memory_space<vmem>>, vector<1x512xf32>
    %c0_6 = arith.constant 0 : index
    %c0_7 = arith.constant 0 : index
    %6 = vector.load %arg9[%c0_6, %c0_7] : memref<16x128xf32, #tpu.memory_space<vmem>>, vector<16x128xf32>
    %c0_8 = arith.constant 0 : index
    %c0_9 = arith.constant 0 : index
    %7 = vector.load %arg10[%c0_8, %c0_9] : memref<16x128xf32, #tpu.memory_space<vmem>>, vector<16x128xf32>
    %c0_i32_10 = arith.constant 0 : i32
    %c16_i32 = arith.constant 16 : i32
    %8 = arith.muli %c0_i32_10, %c16_i32 : i32
    %9 = tpu.assume_multiple %8, 16 : i32
    %10 = arith.index_cast %9 : i32 to index
    %c0_11 = arith.constant 0 : index
    %11 = vector.load %arg1[%10, %c0_11] : memref<64x512xf32, #tpu.memory_space<vmem>>, vector<16x512xf32>
    %12 = arith.truncf %6 : vector<16x128xf32> to vector<16x128xbf16>
    %cst = arith.constant dense<0.000000e+00> : vector<16x512xf32>
    %13 = tpu.matmul %12, %3, %cst {dimension_numbers = #tpu.dot_dimension_numbers<[1], [0], [0], [1], [0, 0, 1, 1], [], []>} : vector<16x128xbf16>, vector<128x512xbf16>, vector<16x512xf32> -> vector<16x512xf32>
    %14 = arith.addf %11, %13 : vector<16x512xf32>
    %15 = arith.negf %14 : vector<16x512xf32>
    %16 = math.exp %15 : vector<16x512xf32>
    %cst_12 = arith.constant 1.000000e+00 : f32
    %17 = vector.broadcast %cst_12 : f32 to vector<16x512xf32>
    %18 = arith.addf %17, %16 : vector<16x512xf32>
    %19 = arith.divf %17, %18 : vector<16x512xf32>
    %20 = vector.extract_strided_slice %19 {offsets = [0, 0], sizes = [16, 128], strides = [1, 1]} : vector<16x512xf32> to vector<16x128xf32>
    %21 = vector.extract_strided_slice %19 {offsets = [0, 128], sizes = [16, 128], strides = [1, 1]} : vector<16x512xf32> to vector<16x128xf32>
    %22 = vector.extract_strided_slice %19 {offsets = [0, 256], sizes = [16, 128], strides = [1, 1]} : vector<16x512xf32> to vector<16x128xf32>
    %cst_13 = arith.constant 2.000000e+00 : f32
    %23 = vector.broadcast %cst_13 : f32 to vector<16x128xf32>
    %24 = arith.mulf %23, %22 : vector<16x128xf32>
    %cst_14 = arith.constant 1.000000e+00 : f32
    %25 = vector.broadcast %cst_14 : f32 to vector<16x128xf32>
    %26 = arith.subf %24, %25 : vector<16x128xf32>
    %27 = vector.extract_strided_slice %19 {offsets = [0, 384], sizes = [16, 128], strides = [1, 1]} : vector<16x512xf32> to vector<16x128xf32>
    %28 = arith.mulf %21, %7 : vector<16x128xf32>
    %29 = arith.mulf %20, %26 : vector<16x128xf32>
    %30 = arith.addf %28, %29 : vector<16x128xf32>
    %31 = math.tanh %30 : vector<16x128xf32>
    %32 = arith.mulf %27, %31 : vector<16x128xf32>
    %33 = arith.truncf %32 : vector<16x128xf32> to vector<16x128xbf16>
    %34 = arith.index_cast %9 : i32 to index
    %c0_15 = arith.constant 0 : index
    %35 = vector.load %arg13[%34, %c0_15] : memref<64x128xbf16, #tpu.memory_space<vmem>>, vector<16x128xbf16>
    tpu.vector_store %arg13[%34, %c0_15], %33 {strides = array<i32>} : memref<64x128xbf16, #tpu.memory_space<vmem>>, vector<16x128xbf16>,
    %c1_i32 = arith.constant 1 : i32
    %c16_i32_16 = arith.constant 16 : i32
    %36 = arith.muli %c1_i32, %c16_i32_16 : i32
    %37 = tpu.assume_multiple %36, 16 : i32
    %38 = arith.index_cast %37 : i32 to index
    %c0_17 = arith.constant 0 : index
    %39 = vector.load %arg1[%38, %c0_17] : memref<64x512xf32, #tpu.memory_space<vmem>>, vector<16x512xf32>
    %40 = arith.truncf %32 : vector<16x128xf32> to vector<16x128xbf16>
    %cst_18 = arith.constant dense<0.000000e+00> : vector<16x512xf32>
    %41 = tpu.matmul %40, %3, %cst_18 {dimension_numbers = #tpu.dot_dimension_numbers<[1], [0], [0], [1], [0, 0, 1, 1], [], []>} : vector<16x128xbf16>, vector<128x512xbf16>, vector<16x512xf32> -> vector<16x512xf32>
    %42 = arith.addf %39, %41 : vector<16x512xf32>
    %43 = arith.negf %42 : vector<16x512xf32>
    %44 = math.exp %43 : vector<16x512xf32>
    %cst_19 = arith.constant 1.000000e+00 : f32
    %45 = vector.broadcast %cst_19 : f32 to vector<16x512xf32>
    %46 = arith.addf %45, %44 : vector<16x512xf32>
    %47 = arith.divf %45, %46 : vector<16x512xf32>
    %48 = vector.extract_strided_slice %47 {offsets = [0, 0], sizes = [16, 128], strides = [1, 1]} : vector<16x512xf32> to vector<16x128xf32>
    %49 = vector.extract_strided_slice %47 {offsets = [0, 128], sizes = [16, 128], strides = [1, 1]} : vector<16x512xf32> to vector<16x128xf32>
    %50 = vector.extract_strided_slice %47 {offsets = [0, 256], sizes = [16, 128], strides = [1, 1]} : vector<16x512xf32> to vector<16x128xf32>
    %cst_20 = arith.constant 2.000000e+00 : f32
    %51 = vector.broadcast %cst_20 : f32 to vector<16x128xf32>
    %52 = arith.mulf %51, %50 : vector<16x128xf32>
    %cst_21 = arith.constant 1.000000e+00 : f32
    %53 = vector.broadcast %cst_21 : f32 to vector<16x128xf32>
    %54 = arith.subf %52, %53 : vector<16x128xf32>
    %55 = vector.extract_strided_slice %47 {offsets = [0, 384], sizes = [16, 128], strides = [1, 1]} : vector<16x512xf32> to vector<16x128xf32>
    %56 = arith.mulf %49, %30 : vector<16x128xf32>
    %57 = arith.mulf %48, %54 : vector<16x128xf32>
    %58 = arith.addf %56, %57 : vector<16x128xf32>
    %59 = math.tanh %58 : vector<16x128xf32>
    %60 = arith.mulf %55, %59 : vector<16x128xf32>
    %61 = arith.truncf %60 : vector<16x128xf32> to vector<16x128xbf16>
    %62 = arith.index_cast %37 : i32 to index
    %c0_22 = arith.constant 0 : index
    %63 = vector.load %arg13[%62, %c0_22] : memref<64x128xbf16, #tpu.memory_space<vmem>>, vector<16x128xbf16>
    tpu.vector_store %arg13[%62, %c0_22], %61 {strides = array<i32>} : memref<64x128xbf16, #tpu.memory_space<vmem>>, vector<16x128xbf16>,
    %c2_i32 = arith.constant 2 : i32
    %c16_i32_23 = arith.constant 16 : i32
    %64 = arith.muli %c2_i32, %c16_i32_23 : i32
    %65 = tpu.assume_multiple %64, 16 : i32
    %66 = arith.index_cast %65 : i32 to index
    %c0_24 = arith.constant 0 : index
    %67 = vector.load %arg1[%66, %c0_24] : memref<64x512xf32, #tpu.memory_space<vmem>>, vector<16x512xf32>
    %68 = arith.truncf %60 : vector<16x128xf32> to vector<16x128xbf16>
    %cst_25 = arith.constant dense<0.000000e+00> : vector<16x512xf32>
    %69 = tpu.matmul %68, %3, %cst_25 {dimension_numbers = #tpu.dot_dimension_numbers<[1], [0], [0], [1], [0, 0, 1, 1], [], []>} : vector<16x128xbf16>, vector<128x512xbf16>, vector<16x512xf32> -> vector<16x512xf32>
    %70 = arith.addf %67, %69 : vector<16x512xf32>
    %71 = arith.negf %70 : vector<16x512xf32>
    %72 = math.exp %71 : vector<16x512xf32>
    %cst_26 = arith.constant 1.000000e+00 : f32
    %73 = vector.broadcast %cst_26 : f32 to vector<16x512xf32>
    %74 = arith.addf %73, %72 : vector<16x512xf32>
    %75 = arith.divf %73, %74 : vector<16x512xf32>
    %76 = vector.extract_strided_slice %75 {offsets = [0, 0], sizes = [16, 128], strides = [1, 1]} : vector<16x512xf32> to vector<16x128xf32>
    %77 = vector.extract_strided_slice %75 {offsets = [0, 128], sizes = [16, 128], strides = [1, 1]} : vector<16x512xf32> to vector<16x128xf32>
    %78 = vector.extract_strided_slice %75 {offsets = [0, 256], sizes = [16, 128], strides = [1, 1]} : vector<16x512xf32> to vector<16x128xf32>
    %cst_27 = arith.constant 2.000000e+00 : f32
    %79 = vector.broadcast %cst_27 : f32 to vector<16x128xf32>
    %80 = arith.mulf %79, %78 : vector<16x128xf32>
    %cst_28 = arith.constant 1.000000e+00 : f32
    %81 = vector.broadcast %cst_28 : f32 to vector<16x128xf32>
    %82 = arith.subf %80, %81 : vector<16x128xf32>
    %83 = vector.extract_strided_slice %75 {offsets = [0, 384], sizes = [16, 128], strides = [1, 1]} : vector<16x512xf32> to vector<16x128xf32>
    %84 = arith.mulf %77, %58 : vector<16x128xf32>
    %85 = arith.mulf %76, %82 : vector<16x128xf32>
    %86 = arith.addf %84, %85 : vector<16x128xf32>
    %87 = math.tanh %86 : vector<16x128xf32>
    %88 = arith.mulf %83, %87 : vector<16x128xf32>
    %89 = arith.truncf %88 : vector<16x128xf32> to vector<16x128xbf16>
    %90 = arith.index_cast %65 : i32 to index
    %c0_29 = arith.constant 0 : index
    %91 = vector.load %arg13[%90, %c0_29] : memref<64x128xbf16, #tpu.memory_space<vmem>>, vector<16x128xbf16>
    tpu.vector_store %arg13[%90, %c0_29], %89 {strides = array<i32>} : memref<64x128xbf16, #tpu.memory_space<vmem>>, vector<16x128xbf16>,
    %c3_i32 = arith.constant 3 : i32
    %c16_i32_30 = arith.constant 16 : i32
    %92 = arith.muli %c3_i32, %c16_i32_30 : i32
    %93 = tpu.assume_multiple %92, 16 : i32
    %94 = arith.index_cast %93 : i32 to index
    %c0_31 = arith.constant 0 : index
    %95 = vector.load %arg1[%94, %c0_31] : memref<64x512xf32, #tpu.memory_space<vmem>>, vector<16x512xf32>
    %96 = arith.truncf %88 : vector<16x128xf32> to vector<16x128xbf16>
    %cst_32 = arith.constant dense<0.000000e+00> : vector<16x512xf32>
    %97 = tpu.matmul %96, %3, %cst_32 {dimension_numbers = #tpu.dot_dimension_numbers<[1], [0], [0], [1], [0, 0, 1, 1], [], []>} : vector<16x128xbf16>, vector<128x512xbf16>, vector<16x512xf32> -> vector<16x512xf32>
    %98 = arith.addf %95, %97 : vector<16x512xf32>
    %99 = arith.negf %98 : vector<16x512xf32>
    %100 = math.exp %99 : vector<16x512xf32>
    %cst_33 = arith.constant 1.000000e+00 : f32
    %101 = vector.broadcast %cst_33 : f32 to vector<16x512xf32>
    %102 = arith.addf %101, %100 : vector<16x512xf32>
    %103 = arith.divf %101, %102 : vector<16x512xf32>
    %104 = vector.extract_strided_slice %103 {offsets = [0, 0], sizes = [16, 128], strides = [1, 1]} : vector<16x512xf32> to vector<16x128xf32>
    %105 = vector.extract_strided_slice %103 {offsets = [0, 128], sizes = [16, 128], strides = [1, 1]} : vector<16x512xf32> to vector<16x128xf32>
    %106 = vector.extract_strided_slice %103 {offsets = [0, 256], sizes = [16, 128], strides = [1, 1]} : vector<16x512xf32> to vector<16x128xf32>
    %cst_34 = arith.constant 2.000000e+00 : f32
    %107 = vector.broadcast %cst_34 : f32 to vector<16x128xf32>
    %108 = arith.mulf %107, %106 : vector<16x128xf32>
    %cst_35 = arith.constant 1.000000e+00 : f32
    %109 = vector.broadcast %cst_35 : f32 to vector<16x128xf32>
    %110 = arith.subf %108, %109 : vector<16x128xf32>
    %111 = vector.extract_strided_slice %103 {offsets = [0, 384], sizes = [16, 128], strides = [1, 1]} : vector<16x512xf32> to vector<16x128xf32>
    %112 = arith.mulf %105, %86 : vector<16x128xf32>
    %113 = arith.mulf %104, %110 : vector<16x128xf32>
    %114 = arith.addf %112, %113 : vector<16x128xf32>
    %115 = math.tanh %114 : vector<16x128xf32>
    %116 = arith.mulf %111, %115 : vector<16x128xf32>
    %117 = arith.truncf %116 : vector<16x128xf32> to vector<16x128xbf16>
    %118 = arith.index_cast %93 : i32 to index
    %c0_36 = arith.constant 0 : index
    %119 = vector.load %arg13[%118, %c0_36] : memref<64x128xbf16, #tpu.memory_space<vmem>>, vector<16x128xbf16>
    tpu.vector_store %arg13[%118, %c0_36], %117 {strides = array<i32>} : memref<64x128xbf16, #tpu.memory_space<vmem>>, vector<16x128xbf16>,
    %c4_i32 = arith.constant 4 : i32
    %c0_37 = arith.constant 0 : index
    %c0_38 = arith.constant 0 : index
    %120 = vector.load %arg9[%c0_37, %c0_38] : memref<16x128xf32, #tpu.memory_space<vmem>>, vector<16x128xf32>
    tpu.vector_store %arg9[%c0_37, %c0_38], %116 {strides = array<i32>} : memref<16x128xf32, #tpu.memory_space<vmem>>, vector<16x128xf32>,
    %c0_39 = arith.constant 0 : index
    %c0_40 = arith.constant 0 : index
    %121 = vector.load %arg10[%c0_39, %c0_40] : memref<16x128xf32, #tpu.memory_space<vmem>>, vector<16x128xf32>
    tpu.vector_store %arg10[%c0_39, %c0_40], %114 {strides = array<i32>} : memref<16x128xf32, #tpu.memory_space<vmem>>, vector<16x128xf32>,
    %c0_41 = arith.constant 0 : index
    %c0_42 = arith.constant 0 : index
    %122 = vector.load %arg13[%c0_41, %c0_42] : memref<64x128xbf16, #tpu.memory_space<vmem>>, vector<64x128xbf16>
    %c0_43 = arith.constant 0 : index
    %c0_44 = arith.constant 0 : index
    %123 = vector.load %arg3[%c0_43, %c0_44] : memref<128x512xbf16, #tpu.memory_space<vmem>>, vector<128x512xbf16>
    %cst_45 = arith.constant dense<0.000000e+00> : vector<64x512xf32>
    %124 = tpu.matmul %122, %123, %cst_45 {dimension_numbers = #tpu.dot_dimension_numbers<[1], [0], [0], [1], [0, 0, 1, 1], [], []>} : vector<64x128xbf16>, vector<128x512xbf16>, vector<64x512xf32> -> vector<64x512xf32>
    %125 = vector.broadcast %5 : vector<1x512xf32> to vector<64x512xf32>
    %126 = arith.addf %124, %125 : vector<64x512xf32>
    %c0_46 = arith.constant 0 : index
    %c0_47 = arith.constant 0 : index
    %127 = vector.load %arg14[%c0_46, %c0_47] : memref<64x512xf32, #tpu.memory_space<vmem>>, vector<64x512xf32>
    tpu.vector_store %arg14[%c0_46, %c0_47], %126 {strides = array<i32>} : memref<64x512xf32, #tpu.memory_space<vmem>>, vector<64x512xf32>,
    %c0_48 = arith.constant 0 : index
    %c0_49 = arith.constant 0 : index
    %128 = vector.load %arg11[%c0_48, %c0_49] : memref<16x128xf32, #tpu.memory_space<vmem>>, vector<16x128xf32>
    %c0_50 = arith.constant 0 : index
    %c0_51 = arith.constant 0 : index
    %129 = vector.load %arg12[%c0_50, %c0_51] : memref<16x128xf32, #tpu.memory_space<vmem>>, vector<16x128xf32>
    %c0_i32_52 = arith.constant 0 : i32
    %c16_i32_53 = arith.constant 16 : i32
    %130 = arith.muli %c0_i32_52, %c16_i32_53 : i32
    %131 = tpu.assume_multiple %130, 16 : i32
    %132 = arith.index_cast %131 : i32 to index
    %c0_54 = arith.constant 0 : index
    %133 = vector.load %arg14[%132, %c0_54] : memref<64x512xf32, #tpu.memory_space<vmem>>, vector<16x512xf32>
    %134 = arith.truncf %128 : vector<16x128xf32> to vector<16x128xbf16>
    %cst_55 = arith.constant dense<0.000000e+00> : vector<16x512xf32>
    %135 = tpu.matmul %134, %4, %cst_55 {dimension_numbers = #tpu.dot_dimension_numbers<[1], [0], [0], [1], [0, 0, 1, 1], [], []>} : vector<16x128xbf16>, vector<128x512xbf16>, vector<16x512xf32> -> vector<16x512xf32>
    %136 = arith.addf %133, %135 : vector<16x512xf32>
    %137 = arith.negf %136 : vector<16x512xf32>
    %138 = math.exp %137 : vector<16x512xf32>
    %cst_56 = arith.constant 1.000000e+00 : f32
    %139 = vector.broadcast %cst_56 : f32 to vector<16x512xf32>
    %140 = arith.addf %139, %138 : vector<16x512xf32>
    %141 = arith.divf %139, %140 : vector<16x512xf32>
    %142 = vector.extract_strided_slice %141 {offsets = [0, 0], sizes = [16, 128], strides = [1, 1]} : vector<16x512xf32> to vector<16x128xf32>
    %143 = vector.extract_strided_slice %141 {offsets = [0, 128], sizes = [16, 128], strides = [1, 1]} : vector<16x512xf32> to vector<16x128xf32>
    %144 = vector.extract_strided_slice %141 {offsets = [0, 256], sizes = [16, 128], strides = [1, 1]} : vector<16x512xf32> to vector<16x128xf32>
    %cst_57 = arith.constant 2.000000e+00 : f32
    %145 = vector.broadcast %cst_57 : f32 to vector<16x128xf32>
    %146 = arith.mulf %145, %144 : vector<16x128xf32>
    %cst_58 = arith.constant 1.000000e+00 : f32
    %147 = vector.broadcast %cst_58 : f32 to vector<16x128xf32>
    %148 = arith.subf %146, %147 : vector<16x128xf32>
    %149 = vector.extract_strided_slice %141 {offsets = [0, 384], sizes = [16, 128], strides = [1, 1]} : vector<16x512xf32> to vector<16x128xf32>
    %150 = arith.mulf %143, %129 : vector<16x128xf32>
    %151 = arith.mulf %142, %148 : vector<16x128xf32>
    %152 = arith.addf %150, %151 : vector<16x128xf32>
    %153 = math.tanh %152 : vector<16x128xf32>
    %154 = arith.mulf %149, %153 : vector<16x128xf32>
    %c1_i32_59 = arith.constant 1 : i32
    %c16_i32_60 = arith.constant 16 : i32
    %155 = arith.muli %c1_i32_59, %c16_i32_60 : i32
    %156 = tpu.assume_multiple %155, 16 : i32
    %157 = arith.index_cast %156 : i32 to index
    %c0_61 = arith.constant 0 : index
    %158 = vector.load %arg14[%157, %c0_61] : memref<64x512xf32, #tpu.memory_space<vmem>>, vector<16x512xf32>
    %159 = arith.truncf %154 : vector<16x128xf32> to vector<16x128xbf16>
    %cst_62 = arith.constant dense<0.000000e+00> : vector<16x512xf32>
    %160 = tpu.matmul %159, %4, %cst_62 {dimension_numbers = #tpu.dot_dimension_numbers<[1], [0], [0], [1], [0, 0, 1, 1], [], []>} : vector<16x128xbf16>, vector<128x512xbf16>, vector<16x512xf32> -> vector<16x512xf32>
    %161 = arith.addf %158, %160 : vector<16x512xf32>
    %162 = arith.negf %161 : vector<16x512xf32>
    %163 = math.exp %162 : vector<16x512xf32>
    %cst_63 = arith.constant 1.000000e+00 : f32
    %164 = vector.broadcast %cst_63 : f32 to vector<16x512xf32>
    %165 = arith.addf %164, %163 : vector<16x512xf32>
    %166 = arith.divf %164, %165 : vector<16x512xf32>
    %167 = vector.extract_strided_slice %166 {offsets = [0, 0], sizes = [16, 128], strides = [1, 1]} : vector<16x512xf32> to vector<16x128xf32>
    %168 = vector.extract_strided_slice %166 {offsets = [0, 128], sizes = [16, 128], strides = [1, 1]} : vector<16x512xf32> to vector<16x128xf32>
    %169 = vector.extract_strided_slice %166 {offsets = [0, 256], sizes = [16, 128], strides = [1, 1]} : vector<16x512xf32> to vector<16x128xf32>
    %cst_64 = arith.constant 2.000000e+00 : f32
    %170 = vector.broadcast %cst_64 : f32 to vector<16x128xf32>
    %171 = arith.mulf %170, %169 : vector<16x128xf32>
    %cst_65 = arith.constant 1.000000e+00 : f32
    %172 = vector.broadcast %cst_65 : f32 to vector<16x128xf32>
    %173 = arith.subf %171, %172 : vector<16x128xf32>
    %174 = vector.extract_strided_slice %166 {offsets = [0, 384], sizes = [16, 128], strides = [1, 1]} : vector<16x512xf32> to vector<16x128xf32>
    %175 = arith.mulf %168, %152 : vector<16x128xf32>
    %176 = arith.mulf %167, %173 : vector<16x128xf32>
    %177 = arith.addf %175, %176 : vector<16x128xf32>
    %178 = math.tanh %177 : vector<16x128xf32>
    %179 = arith.mulf %174, %178 : vector<16x128xf32>
    %c2_i32_66 = arith.constant 2 : i32
    %c16_i32_67 = arith.constant 16 : i32
    %180 = arith.muli %c2_i32_66, %c16_i32_67 : i32
    %181 = tpu.assume_multiple %180, 16 : i32
    %182 = arith.index_cast %181 : i32 to index
    %c0_68 = arith.constant 0 : index
    %183 = vector.load %arg14[%182, %c0_68] : memref<64x512xf32, #tpu.memory_space<vmem>>, vector<16x512xf32>
    %184 = arith.truncf %179 : vector<16x128xf32> to vector<16x128xbf16>
    %cst_69 = arith.constant dense<0.000000e+00> : vector<16x512xf32>
    %185 = tpu.matmul %184, %4, %cst_69 {dimension_numbers = #tpu.dot_dimension_numbers<[1], [0], [0], [1], [0, 0, 1, 1], [], []>} : vector<16x128xbf16>, vector<128x512xbf16>, vector<16x512xf32> -> vector<16x512xf32>
    %186 = arith.addf %183, %185 : vector<16x512xf32>
    %187 = arith.negf %186 : vector<16x512xf32>
    %188 = math.exp %187 : vector<16x512xf32>
    %cst_70 = arith.constant 1.000000e+00 : f32
    %189 = vector.broadcast %cst_70 : f32 to vector<16x512xf32>
    %190 = arith.addf %189, %188 : vector<16x512xf32>
    %191 = arith.divf %189, %190 : vector<16x512xf32>
    %192 = vector.extract_strided_slice %191 {offsets = [0, 0], sizes = [16, 128], strides = [1, 1]} : vector<16x512xf32> to vector<16x128xf32>
    %193 = vector.extract_strided_slice %191 {offsets = [0, 128], sizes = [16, 128], strides = [1, 1]} : vector<16x512xf32> to vector<16x128xf32>
    %194 = vector.extract_strided_slice %191 {offsets = [0, 256], sizes = [16, 128], strides = [1, 1]} : vector<16x512xf32> to vector<16x128xf32>
    %cst_71 = arith.constant 2.000000e+00 : f32
    %195 = vector.broadcast %cst_71 : f32 to vector<16x128xf32>
    %196 = arith.mulf %195, %194 : vector<16x128xf32>
    %cst_72 = arith.constant 1.000000e+00 : f32
    %197 = vector.broadcast %cst_72 : f32 to vector<16x128xf32>
    %198 = arith.subf %196, %197 : vector<16x128xf32>
    %199 = vector.extract_strided_slice %191 {offsets = [0, 384], sizes = [16, 128], strides = [1, 1]} : vector<16x512xf32> to vector<16x128xf32>
    %200 = arith.mulf %193, %177 : vector<16x128xf32>
    %201 = arith.mulf %192, %198 : vector<16x128xf32>
    %202 = arith.addf %200, %201 : vector<16x128xf32>
    %203 = math.tanh %202 : vector<16x128xf32>
    %204 = arith.mulf %199, %203 : vector<16x128xf32>
    %c3_i32_73 = arith.constant 3 : i32
    %c16_i32_74 = arith.constant 16 : i32
    %205 = arith.muli %c3_i32_73, %c16_i32_74 : i32
    %206 = tpu.assume_multiple %205, 16 : i32
    %207 = arith.index_cast %206 : i32 to index
    %c0_75 = arith.constant 0 : index
    %208 = vector.load %arg14[%207, %c0_75] : memref<64x512xf32, #tpu.memory_space<vmem>>, vector<16x512xf32>
    %209 = arith.truncf %204 : vector<16x128xf32> to vector<16x128xbf16>
    %cst_76 = arith.constant dense<0.000000e+00> : vector<16x512xf32>
    %210 = tpu.matmul %209, %4, %cst_76 {dimension_numbers = #tpu.dot_dimension_numbers<[1], [0], [0], [1], [0, 0, 1, 1], [], []>} : vector<16x128xbf16>, vector<128x512xbf16>, vector<16x512xf32> -> vector<16x512xf32>
    %211 = arith.addf %208, %210 : vector<16x512xf32>
    %212 = arith.negf %211 : vector<16x512xf32>
    %213 = math.exp %212 : vector<16x512xf32>
    %cst_77 = arith.constant 1.000000e+00 : f32
    %214 = vector.broadcast %cst_77 : f32 to vector<16x512xf32>
    %215 = arith.addf %214, %213 : vector<16x512xf32>
    %216 = arith.divf %214, %215 : vector<16x512xf32>
    %217 = vector.extract_strided_slice %216 {offsets = [0, 0], sizes = [16, 128], strides = [1, 1]} : vector<16x512xf32> to vector<16x128xf32>
    %218 = vector.extract_strided_slice %216 {offsets = [0, 128], sizes = [16, 128], strides = [1, 1]} : vector<16x512xf32> to vector<16x128xf32>
    %219 = vector.extract_strided_slice %216 {offsets = [0, 256], sizes = [16, 128], strides = [1, 1]} : vector<16x512xf32> to vector<16x128xf32>
    %cst_78 = arith.constant 2.000000e+00 : f32
    %220 = vector.broadcast %cst_78 : f32 to vector<16x128xf32>
    %221 = arith.mulf %220, %219 : vector<16x128xf32>
    %cst_79 = arith.constant 1.000000e+00 : f32
    %222 = vector.broadcast %cst_79 : f32 to vector<16x128xf32>
    %223 = arith.subf %221, %222 : vector<16x128xf32>
    %224 = vector.extract_strided_slice %216 {offsets = [0, 384], sizes = [16, 128], strides = [1, 1]} : vector<16x512xf32> to vector<16x128xf32>
    %225 = arith.mulf %218, %202 : vector<16x128xf32>
    %226 = arith.mulf %217, %223 : vector<16x128xf32>
    %227 = arith.addf %225, %226 : vector<16x128xf32>
    %228 = math.tanh %227 : vector<16x128xf32>
    %229 = arith.mulf %224, %228 : vector<16x128xf32>
    %c4_i32_80 = arith.constant 4 : i32
    %c0_81 = arith.constant 0 : index
    %c0_82 = arith.constant 0 : index
    %230 = vector.load %arg11[%c0_81, %c0_82] : memref<16x128xf32, #tpu.memory_space<vmem>>, vector<16x128xf32>
    tpu.vector_store %arg11[%c0_81, %c0_82], %229 {strides = array<i32>} : memref<16x128xf32, #tpu.memory_space<vmem>>, vector<16x128xf32>,
    %c0_83 = arith.constant 0 : index
    %c0_84 = arith.constant 0 : index
    %231 = vector.load %arg12[%c0_83, %c0_84] : memref<16x128xf32, #tpu.memory_space<vmem>>, vector<16x128xf32>
    tpu.vector_store %arg12[%c0_83, %c0_84], %227 {strides = array<i32>} : memref<16x128xf32, #tpu.memory_space<vmem>>, vector<16x128xf32>,
    %c1_i32_85 = arith.constant 1 : i32
    %232 = arith.cmpi eq, %arg0, %c1_i32_85 : i32
    %233 = arith.extui %232 : i1 to i32
    %c0_i32_86 = arith.constant 0 : i32
    %234 = arith.cmpi ne, %233, %c0_i32_86 : i32
    scf.if %234 {
      %c0_87 = arith.constant 0 : index
      %c0_88 = arith.constant 0 : index
      %235 = vector.load %arg6[%c0_87, %c0_88] : memref<1x128xf32, #tpu.memory_space<vmem>>, vector<1x128xf32>
      %236 = vector.broadcast %235 : vector<1x128xf32> to vector<16x128xf32>
      %237 = arith.mulf %229, %236 : vector<16x128xf32>
      %cst_89 = arith.constant dense<0.000000e+00> : vector<16xf32>
      %238 = vector.multi_reduction <add>, %237, %cst_89 [1] : vector<16x128xf32> to vector<16xf32>
      %239 = vector.shape_cast %238 : vector<16xf32> to vector<16x1xf32>
      %c0_90 = arith.constant 0 : index
      %c0_91 = arith.constant 0 : index
      %240 = vector.load %arg7[%c0_90, %c0_91] : memref<1x1xf32, #tpu.memory_space<vmem>>, vector<1x1xf32>
      %241 = vector.broadcast %240 : vector<1x1xf32> to vector<16x1xf32>
      %242 = arith.addf %239, %241 : vector<16x1xf32>
      %c0_92 = arith.constant 0 : index
      %c0_93 = arith.constant 0 : index
      %243 = vector.load %arg8[%c0_92, %c0_93] : memref<16x1xf32, #tpu.memory_space<vmem>>, vector<16x1xf32>
      tpu.vector_store %arg8[%c0_92, %c0_93], %242 {strides = array<i32>} : memref<16x1xf32, #tpu.memory_space<vmem>>, vector<16x1xf32>,
    } else {
    }
    return
  }
  func.func @transform_0(%arg0: i32) -> (i32, i32) {
    %c0_i32 = arith.constant 0 : i32
    %c0_i32_0 = arith.constant 0 : i32
    return %arg0, %c0_i32 : i32, i32
  }
  func.func @transform_1(%arg0: i32) -> (i32, i32) {
    %c0_i32 = arith.constant 0 : i32
    %c0_i32_0 = arith.constant 0 : i32
    %c0_i32_1 = arith.constant 0 : i32
    return %c0_i32, %c0_i32_0 : i32, i32
  }
  func.func @transform_2(%arg0: i32) -> (i32, i32) {
    %c0_i32 = arith.constant 0 : i32
    %c0_i32_0 = arith.constant 0 : i32
    %c0_i32_1 = arith.constant 0 : i32
    return %c0_i32, %c0_i32_0 : i32, i32
  }
  func.func @transform_3(%arg0: i32) -> (i32, i32) {
    %c0_i32 = arith.constant 0 : i32
    %c0_i32_0 = arith.constant 0 : i32
    %c0_i32_1 = arith.constant 0 : i32
    return %c0_i32, %c0_i32_0 : i32, i32
  }
  func.func @transform_4(%arg0: i32) -> (i32, i32) {
    %c0_i32 = arith.constant 0 : i32
    %c0_i32_0 = arith.constant 0 : i32
    %c0_i32_1 = arith.constant 0 : i32
    return %c0_i32, %c0_i32_0 : i32, i32
  }
  func.func @transform_5(%arg0: i32) -> (i32, i32) {
    %c0_i32 = arith.constant 0 : i32
    %c0_i32_0 = arith.constant 0 : i32
    %c0_i32_1 = arith.constant 0 : i32
    return %c0_i32, %c0_i32_0 : i32, i32
  }
  func.func @transform_6(%arg0: i32) -> (i32, i32) {
    %c0_i32 = arith.constant 0 : i32
    %c0_i32_0 = arith.constant 0 : i32
    %c0_i32_1 = arith.constant 0 : i32
    return %c0_i32, %c0_i32_0 : i32, i32
  }
  func.func @transform_7(%arg0: i32) -> (i32, i32) {
    %c0_i32 = arith.constant 0 : i32
    %c0_i32_0 = arith.constant 0 : i32
    %c0_i32_1 = arith.constant 0 : i32
    return %c0_i32, %c0_i32_0 : i32, i32
  }
}

</mosaic_0001>

<llo_original>
// kernel: tpu_custom_call.1
$region0: #{tpu_custom_call.1}
  #allocation0 [shape = 'u32[]', space=smem, size = 0x4, offset = 0x4, fixed_abs, tag = 'smem constant byte address 0x4 - core index']
  #allocation1 [shape = 'u32[144,128]{1,0:T(1,128)}', space=vmem, size = 0x12000, scoped, tag = 'internal scratch']
  #allocation2 [shape = 'f32[16,128]{1,0:T(8,128)}', space=vmem, size = 0x2000, scoped, tag = 'scratch operand']
  #allocation3 [shape = 'f32[16,128]{1,0:T(8,128)}', space=vmem, size = 0x2000, scoped, tag = 'scratch operand']
  #allocation4 [shape = 'f32[16,128]{1,0:T(8,128)}', space=vmem, size = 0x2000, scoped, tag = 'scratch operand']
  #allocation5 [shape = 'f32[16,128]{1,0:T(8,128)}', space=vmem, size = 0x2000, scoped, tag = 'scratch operand']
  #allocation6 [shape = 'bf16[64,128]{1,0:T(16,128)(2,1)}', space=vmem, size = 0x4000, scoped, tag = 'scratch operand']
  #allocation7 [shape = 'f32[64,512]{1,0:T(8,128)}', space=vmem, size = 0x20000, scoped, tag = 'scratch operand']
  #allocation8 [shape = 'f32[1,1]{1,0:T(1,128)S(1)}', space=vmem, size = 0x200, scoped, tag = 'scoped memory for tpu_custom_call.1']
  %s0 = inlined_call_operand.hbm [shape: f32[128,512], index: 0, kind: input, shape index: {}]
  %s1 = inlined_call_operand.hbm [shape: bf16[128,512], index: 1, kind: input, shape index: {}]
  %s2 = inlined_call_operand.hbm [shape: bf16[128,512], index: 2, kind: input, shape index: {}]
  %s3 = inlined_call_operand.hbm [shape: bf16[128,512], index: 3, kind: input, shape index: {}]
  %s4 = inlined_call_operand.vmem [shape: f32[1,512], index: 4, kind: input, shape index: {}]
  %s5 = inlined_call_operand.vmem [shape: f32[1,128], index: 5, kind: input, shape index: {}]
  %s6 = inlined_call_operand.<no memory space> [shape: f32[1,1], index: 6, kind: input, shape index: {}]
  %s7 = inlined_call_operand.vmem [shape: f32[16,1], index: 7, kind: output, shape index: {}]
  %s8 = sld [smem:[#allocation0]]
  $region85: #{tpu_custom_call.1} parent=0
    _
  %s10 = ssub.s32 1, %s8
  %s11 = scalar_select 0, %s10, %s8
  %v12 = vstv %s6
  %13 = vst [vmem:[#allocation8] sm:$0x1] %v12
  $region1: #{tpu_custom_call.1} parent=0
    #allocation9 [shape = 'u8[262144]{0}', space=vmem, size = 0x40000, scoped, tag = 'input window, operand 0']
    #allocation10 [shape = 's32[2]{0}', space=sflag, size = 0x8, scoped, tag = 'scoped memory for tpu_custom_call.1']
    #allocation11 [shape = 'u8[131072]{0}', space=vmem, size = 0x20000, scoped, tag = 'input window, operand 1, single buffered']
    #allocation12 [shape = 's32[1]{0}', space=sflag, size = 0x4, scoped, tag = 'scoped memory for tpu_custom_call.1']
    #allocation13 [shape = 'u8[131072]{0}', space=vmem, size = 0x20000, scoped, tag = 'input window, operand 2, single buffered']
    #allocation14 [shape = 'u8[131072]{0}', space=vmem, size = 0x20000, scoped, tag = 'input window, operand 3, single buffered']
    #allocation15 [shape = 's32[1]{0}', space=sflag, size = 0x4, scoped, tag = 'scoped memory for tpu_custom_call.1']
    %14 = vsyncpa [#allocation10], 0
    %s15 = scalar_lea.sflag [#allocation10], 1
    %16 = vsyncpa %s15, 0
    %17 = vsyncpa [#allocation12], 0
    %18 = vsyncpa [#allocation15], 0
    loop: start=0, step=1, limit=4
    $region2: #{tpu_custom_call.1} parent=1 // loop_pre_header
      _
    $region3: #{tpu_custom_call.1} parent=1 // loop_header
      %s20 = sphi 0, %s24
      %p21 = scmp.ge.s32.totalorder %s20, 4
      %s30 = sphi 0, %s32
      %s33 = sphi 0, %s30
      %s34 = sphi 0, %s33
      %s50 = sphi 0, %s34
      %s54 = sphi 0, %s54
      %s56 = sphi 0, %s54
      %s57 = sphi 0, %s56
      %s71 = sphi 0, %s57
      %s75 = sphi 0, %s75
      %s77 = sphi 0, %s75
      %s78 = sphi 0, %s77
      %s92 = sphi 0, %s78
      %s96 = sphi 0, %s96
      %s98 = sphi 0, %s96
      %s99 = sphi 0, %s98
      %s113 = sphi 0, %s99
      %s117 = sphi 0, %s117
      %s119 = sphi 0, %s117
      %s120 = sphi 0, %s119
      %s134 = sphi 0, %s120
      %s138 = sphi 0, %s138
      %s140 = sphi 0, %s138
      %s141 = sphi 0, %s140
      %s155 = sphi 0, %s141
      %s159 = sphi 0, %s159
      %s161 = sphi 0, %s159
      %s162 = sphi 0, %s161
      %s176 = sphi 0, %s162
      %s180 = sphi 0, %s180
      %s182 = sphi 0, %s180
      %s183 = sphi 0, %s182
      %s197 = sphi 0, %s183
    $region4: #{tpu_custom_call.1} parent=1 // loop_header_branch
      %23 = sbr.rel (%p21) target = $region8
    $region5: #{tpu_custom_call.1} parent=1 // loop_body
      %s25 = ssub.s32 %s20, 1
      %s26 = ssub.s32 %s20, 2
      %s27 = sadd.s32 %s20, 1
      %s28 = ssub.s32 %s20, %s27
      %p29 = scmp.eq.s32.totalorder %s28, 0
      %s31 = sadd.s32 %s30, 1
      %s32 = scalar_select %p29, %s30, %s31
      %p35 = pneg %p29
      %p36 = scmp.eq.s32.totalorder %s20, 1
      %p37 = por %p35, %p36
      %p38 = scmp.ne.s32.totalorder %s30, %s33
      %p39 = scmp.eq.s32.totalorder %s20, 0
      %p40 = por %p38, %p39
      %p41 = scmp.ne.s32.totalorder %s30, %s33
      %p42 = scmp.eq.s32.totalorder %s25, 1
      %p43 = por %p41, %p42
      %p44 = scmp.ne.s32.totalorder %s33, %s34
      %p45 = scmp.eq.s32.totalorder %s25, 0
      %p46 = por %p44, %p45
      %p47 = scmp.ne.s32.totalorder %s33, %s34
      %p48 = scmp.eq.s32.totalorder %s26, 1
      %p49 = por %p47, %p48
      %p51 = scmp.ne.s32.totalorder %s34, %s50
      %p52 = scmp.eq.s32.totalorder %s26, 0
      %p53 = por %p51, %p52
      %s55 = sadd.s32 %s54, 1
      %p58 = scmp.eq.s32.totalorder %s20, 1
      %p59 = scmp.ne.s32.totalorder %s54, %s56
      %p60 = scmp.eq.s32.totalorder %s20, 0
      %p61 = por %p59, %p60
      %p62 = scmp.ne.s32.totalorder %s54, %s56
      %p63 = scmp.eq.s32.totalorder %s25, 1
      %p64 = por %p62, %p63
      %p65 = scmp.ne.s32.totalorder %s56, %s57
      %p66 = scmp.eq.s32.totalorder %s25, 0
      %p67 = por %p65, %p66
      %p68 = scmp.ne.s32.totalorder %s56, %s57
      %p69 = scmp.eq.s32.totalorder %s26, 1
      %p70 = por %p68, %p69
      %p72 = scmp.ne.s32.totalorder %s57, %s71
      %p73 = scmp.eq.s32.totalorder %s26, 0
      %p74 = por %p72, %p73
      %s76 = sadd.s32 %s75, 1
      %p79 = scmp.eq.s32.totalorder %s20, 1
      %p80 = scmp.ne.s32.totalorder %s75, %s77
      %p81 = scmp.eq.s32.totalorder %s20, 0
      %p82 = por %p80, %p81
      %p83 = scmp.ne.s32.totalorder %s75, %s77
      %p84 = scmp.eq.s32.totalorder %s25, 1
      %p85 = por %p83, %p84
      %p86 = scmp.ne.s32.totalorder %s77, %s78
      %p87 = scmp.eq.s32.totalorder %s25, 0
      %p88 = por %p86, %p87
      %p89 = scmp.ne.s32.totalorder %s77, %s78
      %p90 = scmp.eq.s32.totalorder %s26, 1
      %p91 = por %p89, %p90
      %p93 = scmp.ne.s32.totalorder %s78, %s92
      %p94 = scmp.eq.s32.totalorder %s26, 0
      %p95 = por %p93, %p94
      %s97 = sadd.s32 %s96, 1
      %p100 = scmp.eq.s32.totalorder %s20, 1
      %p101 = scmp.ne.s32.totalorder %s96, %s98
      %p102 = scmp.eq.s32.totalorder %s20, 0
      %p103 = por %p101, %p102
      %p104 = scmp.ne.s32.totalorder %s96, %s98
      %p105 = scmp.eq.s32.totalorder %s25, 1
      %p106 = por %p104, %p105
      %p107 = scmp.ne.s32.totalorder %s98, %s99
      %p108 = scmp.eq.s32.totalorder %s25, 0
      %p109 = por %p107, %p108
      %p110 = scmp.ne.s32.totalorder %s98, %s99
      %p111 = scmp.eq.s32.totalorder %s26, 1
      %p112 = por %p110, %p111
      %p114 = scmp.ne.s32.totalorder %s99, %s113
      %p115 = scmp.eq.s32.totalorder %s26, 0
      %p116 = por %p114, %p115
      %s118 = sadd.s32 %s117, 1
      %p121 = scmp.eq.s32.totalorder %s20, 1
      %p122 = scmp.ne.s32.totalorder %s117, %s119
      %p123 = scmp.eq.s32.totalorder %s20, 0
      %p124 = por %p122, %p123
      %p125 = scmp.ne.s32.totalorder %s117, %s119
      %p126 = scmp.eq.s32.totalorder %s25, 1
      %p127 = por %p125, %p126
      %p128 = scmp.ne.s32.totalorder %s119, %s120
      %p129 = scmp.eq.s32.totalorder %s25, 0
      %p130 = por %p128, %p129
      %p131 = scmp.ne.s32.totalorder %s119, %s120
      %p132 = scmp.eq.s32.totalorder %s26, 1
      %p133 = por %p131, %p132
      %p135 = scmp.ne.s32.totalorder %s120, %s134
      %p136 = scmp.eq.s32.totalorder %s26, 0
      %p137 = por %p135, %p136
      %s139 = sadd.s32 %s138, 1
      %p142 = scmp.eq.s32.totalorder %s20, 1
      %p143 = scmp.ne.s32.totalorder %s138, %s140
      %p144 = scmp.eq.s32.totalorder %s20, 0
      %p145 = por %p143, %p144
      %p146 = scmp.ne.s32.totalorder %s138, %s140
      %p147 = scmp.eq.s32.totalorder %s25, 1
      %p148 = por %p146, %p147
      %p149 = scmp.ne.s32.totalorder %s140, %s141
      %p150 = scmp.eq.s32.totalorder %s25, 0
      %p151 = por %p149, %p150
      %p152 = scmp.ne.s32.totalorder %s140, %s141
      %p153 = scmp.eq.s32.totalorder %s26, 1
      %p154 = por %p152, %p153
      %p156 = scmp.ne.s32.totalorder %s141, %s155
      %p157 = scmp.eq.s32.totalorder %s26, 0
      %p158 = por %p156, %p157
      %s160 = sadd.s32 %s159, 1
      %p163 = scmp.eq.s32.totalorder %s20, 1
      %p164 = scmp.ne.s32.totalorder %s159, %s161
      %p165 = scmp.eq.s32.totalorder %s20, 0
      %p166 = por %p164, %p165
      %p167 = scmp.ne.s32.totalorder %s159, %s161
      %p168 = scmp.eq.s32.totalorder %s25, 1
      %p169 = por %p167, %p168
      %p170 = scmp.ne.s32.totalorder %s161, %s162
      %p171 = scmp.eq.s32.totalorder %s25, 0
      %p172 = por %p170, %p171
      %p173 = scmp.ne.s32.totalorder %s161, %s162
      %p174 = scmp.eq.s32.totalorder %s26, 1
      %p175 = por %p173, %p174
      %p177 = scmp.ne.s32.totalorder %s162, %s176
      %p178 = scmp.eq.s32.totalorder %s26, 0
      %p179 = por %p177, %p178
      %s181 = sadd.s32 %s180, 1
      %p184 = scmp.eq.s32.totalorder %s20, 1
      %p185 = scmp.ne.s32.totalorder %s180, %s182
      %p186 = scmp.eq.s32.totalorder %s20, 0
      %p187 = por %p185, %p186
      %p188 = scmp.ne.s32.totalorder %s180, %s182
      %p189 = scmp.eq.s32.totalorder %s25, 1
      %p190 = por %p188, %p189
      %p191 = scmp.ne.s32.totalorder %s182, %s183
      %p192 = scmp.eq.s32.totalorder %s25, 0
      %p193 = por %p191, %p192
      %p194 = scmp.ne.s32.totalorder %s182, %s183
      %p195 = scmp.eq.s32.totalorder %s26, 1
      %p196 = por %p194, %p195
      %p198 = scmp.ne.s32.totalorder %s183, %s197
      %p199 = scmp.eq.s32.totalorder %s26, 0
      %p200 = por %p198, %p199
      %p201 = scmp.le.s32.totalorder 1, %s20
      %p202 = scmp.lt.s32.totalorder %s20, 3
      %p203 = pnand %p201, %p202
      %p204 = pneg %p203
      // Predicated region
      $region9: #{tpu_custom_call.1} parent=5 // pred_check
        _
      $region10: #{tpu_custom_call.1} parent=5 // pred_check_branch
        %206 = sbr.rel (%p203) target = $region12
      $region11: #{tpu_custom_call.1} parent=5 // pred_region
        %s207 = ssub.s32 %s20, 1
        // Predicated region
        $region13: #{tpu_custom_call.1} parent=11 // pred_check
          %p208 = pneg %p67
        $region14: #{tpu_custom_call.1} parent=11 // pred_check_branch
          %210 = sbr.rel (%p208) target = $region16
        $region15: #{tpu_custom_call.1} parent=11 // pred_region
          %s212 = ssub.s32 4096, 4096
          %213 = vsyncadd [#allocation12], %s212
          %s214 = sshll.u32 [#allocation11], 4
          %s215 = int_to_ptr.vmem [resolvable:$true] %s214
          %220 = dma.hbm_to_vmem [thread:$0]  %s1, 4096, %s215, [#allocation12], 256, 256, 16
        $region16: #{tpu_custom_call.1} parent=11 // pred_fallthru
          _
        // Predicated region
        $region17: #{tpu_custom_call.1} parent=11 // pred_check
          %p221 = pneg %p88
        $region18: #{tpu_custom_call.1} parent=11 // pred_check_branch
          %223 = sbr.rel (%p221) target = $region20
        $region19: #{tpu_custom_call.1} parent=11 // pred_region
          %s225 = ssub.s32 4096, 4096
          %226 = vsyncadd [#allocation12], %s225
          %s227 = sshll.u32 [#allocation13], 4
          %s228 = int_to_ptr.vmem [resolvable:$true] %s227
          %233 = dma.hbm_to_vmem [thread:$0]  %s2, 4096, %s228, [#allocation12], 256, 256, 16
        $region20: #{tpu_custom_call.1} parent=11 // pred_fallthru
          _
        // Predicated region
        $region21: #{tpu_custom_call.1} parent=11 // pred_check
          %p234 = pneg %p109
        $region22: #{tpu_custom_call.1} parent=11 // pred_check_branch
          %236 = sbr.rel (%p234) target = $region24
        $region23: #{tpu_custom_call.1} parent=11 // pred_region
          %s238 = ssub.s32 4096, 4096
          %239 = vsyncadd [#allocation15], %s238
          %s240 = sshll.u32 [#allocation14], 4
          %s241 = int_to_ptr.vmem [resolvable:$true] %s240
          %246 = dma.hbm_to_vmem [thread:$0]  %s3, 4096, %s241, [#allocation15], 256, 256, 16
        $region24: #{tpu_custom_call.1} parent=11 // pred_fallthru
          _
        // Predicated region
        $region25: #{tpu_custom_call.1} parent=11 // pred_check
          %p247 = pneg %p130
        $region26: #{tpu_custom_call.1} parent=11 // pred_check_branch
          %249 = sbr.rel (%p247) target = $region28
        $region27: #{tpu_custom_call.1} parent=11 // pred_region
          _
        $region28: #{tpu_custom_call.1} parent=11 // pred_fallthru
          _
        // Predicated region
        $region29: #{tpu_custom_call.1} parent=11 // pred_check
          %p250 = pneg %p151
        $region30: #{tpu_custom_call.1} parent=11 // pred_check_branch
          %252 = sbr.rel (%p250) target = $region32
        $region31: #{tpu_custom_call.1} parent=11 // pred_region
          _
        $region32: #{tpu_custom_call.1} parent=11 // pred_fallthru
          _
        // Predicated region
        $region33: #{tpu_custom_call.1} parent=11 // pred_check
          %p253 = pneg %p172
        $region34: #{tpu_custom_call.1} parent=11 // pred_check_branch
          %255 = sbr.rel (%p253) target = $region36
        $region35: #{tpu_custom_call.1} parent=11 // pred_region
          _
        $region36: #{tpu_custom_call.1} parent=11 // pred_fallthru
          _
      $region12: #{tpu_custom_call.1} parent=5 // pred_fallthru
        _
      %p256 = scmp.lt.s32.totalorder %s20, 2
      // Predicated region
      $region37: #{tpu_custom_call.1} parent=5 // pred_check
        %p257 = pneg %p256
      $region38: #{tpu_custom_call.1} parent=5 // pred_check_branch
        %259 = sbr.rel (%p257) target = $region40
      $region39: #{tpu_custom_call.1} parent=5 // pred_region
        // Predicated region
        $region41: #{tpu_custom_call.1} parent=39 // pred_check
          %p260 = pneg %p40
        $region42: #{tpu_custom_call.1} parent=39 // pred_check_branch
          %262 = sbr.rel (%p260) target = $region44
        $region43: #{tpu_custom_call.1} parent=39 // pred_region
          %s263 = sand.u32 %s30, 1
          %s264 = scalar_lea.sflag [#allocation10], %s263
          %s265 = sand.u32 %s30, 1
          %s266 = smul.addr %s265, 256
          %s267 = scalar_lea.vmem [#allocation9], %s266
          %s268 = smul.u32 8, %s20
          %s270 = ssub.s32 4096, 4096
          %271 = vsyncadd %s264, %s270
          %s272 = smul.addr %s268, 4
          %s273 = smul.addr %s272, 128
          %s274 = scalar_lea.hbm %s0, %s273
          %s275 = sshll.u32 %s267, 4
          %s276 = int_to_ptr.vmem [resolvable:$true] %s275
          %281 = dma.hbm_to_vmem [thread:$0]  %s274, 4096, %s276, %s264, 512, 512, 32
        $region44: #{tpu_custom_call.1} parent=39 // pred_fallthru
          _
      $region40: #{tpu_custom_call.1} parent=5 // pred_fallthru
        _
      %p282 = scmp.le.s32.totalorder 1, %s20
      %p283 = scmp.lt.s32.totalorder %s20, 3
      %p284 = pnand %p282, %p283
      %p285 = pneg %p284
      // Predicated region
      $region45: #{tpu_custom_call.1} parent=5 // pred_check
        _
      $region46: #{tpu_custom_call.1} parent=5 // pred_check_branch
        %287 = sbr.rel (%p284) target = $region48
      $region47: #{tpu_custom_call.1} parent=5 // pred_region
        %s288 = ssub.s32 %s20, 1
        %s289 = sand.u32 %s33, 1
        %s290 = scalar_lea.sflag [#allocation10], %s289
        %s291 = sand.u32 %s33, 1
        %s292 = smul.addr %s291, 256
        %s293 = scalar_lea.vmem [#allocation9], %s292
        // Predicated region
        $region49: #{tpu_custom_call.1} parent=47 // pred_check
          %p294 = pneg %p46
        $region50: #{tpu_custom_call.1} parent=47 // pred_check_branch
          %296 = sbr.rel (%p294) target = $region52
        $region51: #{tpu_custom_call.1} parent=47 // pred_region
          %297 = dma.done %s290, 4096
        $region52: #{tpu_custom_call.1} parent=47 // pred_fallthru
          _
        // Predicated region
        $region53: #{tpu_custom_call.1} parent=47 // pred_check
          %p298 = pneg %p67
        $region54: #{tpu_custom_call.1} parent=47 // pred_check_branch
          %300 = sbr.rel (%p298) target = $region56
        $region55: #{tpu_custom_call.1} parent=47 // pred_region
          %301 = dma.done [#allocation12], 4096
        $region56: #{tpu_custom_call.1} parent=47 // pred_fallthru
          _
        // Predicated region
        $region57: #{tpu_custom_call.1} parent=47 // pred_check
          %p302 = pneg %p88
        $region58: #{tpu_custom_call.1} parent=47 // pred_check_branch
          %304 = sbr.rel (%p302) target = $region60
        $region59: #{tpu_custom_call.1} parent=47 // pred_region
          %305 = dma.done [#allocation12], 4096
        $region60: #{tpu_custom_call.1} parent=47 // pred_fallthru
          _
        // Predicated region
        $region61: #{tpu_custom_call.1} parent=47 // pred_check
          %p306 = pneg %p109
        $region62: #{tpu_custom_call.1} parent=47 // pred_check_branch
          %308 = sbr.rel (%p306) target = $region64
        $region63: #{tpu_custom_call.1} parent=47 // pred_region
          %309 = dma.done [#allocation15], 4096
        $region64: #{tpu_custom_call.1} parent=47 // pred_fallthru
          _
        %s310 = sand.u32 %s33, 1
        %s311 = scalar_lea.sflag [#allocation10], %s310
        %s312 = sand.u32 %s33, 1
        %s313 = smul.addr %s312, 256
        %s314 = scalar_lea.vmem [#allocation9], %s313
        %p315 = pneg %p46
        %p316 = pneg %p43
        %p317 = pneg %p67
        %p318 = pneg %p64
        %p319 = pneg %p88
        %p320 = pneg %p85
        %p321 = pneg %p109
        %p322 = pneg %p106
        %p323 = pneg %p130
        %p324 = pneg %p127
        %p325 = pneg %p151
        %p326 = pneg %p148
        %p327 = pneg %p172
        %p328 = pneg %p169
        %p329 = pneg %p193
        %p330 = pneg %p190
        %s331 = smul.u32 8, %s25
        %p333 = scmp.eq.s32.totalorder %s25, 0
        // Predicated region
        $region65: #{tpu_custom_call.1} parent=47 // pred_check
          %p334 = pneg %p333
        $region66: #{tpu_custom_call.1} parent=47 // pred_check_branch
          %336 = sbr.rel (%p334) target = $region68
        $region67: #{tpu_custom_call.1} parent=47 // pred_region
          %337 = vst [vmem:[#allocation2] sm:$0xff] 0.0
          %338 = vst [vmem:[#allocation2 + $0x8] sm:$0xff] 0.0
          %339 = vst [vmem:[#allocation3] sm:$0xff] 0.0
          %340 = vst [vmem:[#allocation3 + $0x8] sm:$0xff] 0.0
          %341 = vst [vmem:[#allocation4] sm:$0xff] 0.0
          %342 = vst [vmem:[#allocation4 + $0x8] sm:$0xff] 0.0
          %343 = vst [vmem:[#allocation5] sm:$0xff] 0.0
          %344 = vst [vmem:[#allocation5 + $0x8] sm:$0xff] 0.0
          %vm345 = vcmask 7168
          %346 = vst.msk [vmem:[%s7] sm:$0xff] %vm345, 0.0
          %347 = vst.msk [vmem:[%s7 + $0x8] sm:$0xff] %vm345, 0.0
        $region68: #{tpu_custom_call.1} parent=47 // pred_fallthru
          _
        %v348 = vld [vmem:[#allocation11] sm:$0xff]
        %v349 = vld [vmem:[#allocation11 + $0x8] sm:$0xff]
        %v350 = vld [vmem:[#allocation11 + $0x10] sm:$0xff]
        %v351 = vld [vmem:[#allocation11 + $0x18] sm:$0xff]
        %v352 = vld [vmem:[#allocation11 + $0x20] sm:$0xff]
        %v353 = vld [vmem:[#allocation11 + $0x28] sm:$0xff]
        %v354 = vld [vmem:[#allocation11 + $0x30] sm:$0xff]
        %v355 = vld [vmem:[#allocation11 + $0x38] sm:$0xff]
        %v356 = vld [vmem:[#allocation11 + $0x40] sm:$0xff]
        %v357 = vld [vmem:[#allocation11 + $0x48] sm:$0xff]
        %v358 = vld [vmem:[#allocation11 + $0x50] sm:$0xff]
        %v359 = vld [vmem:[#allocation11 + $0x58] sm:$0xff]
        %v360 = vld [vmem:[#allocation11 + $0x60] sm:$0xff]
        %v361 = vld [vmem:[#allocation11 + $0x68] sm:$0xff]
        %v362 = vld [vmem:[#allocation11 + $0x70] sm:$0xff]
        %v363 = vld [vmem:[#allocation11 + $0x78] sm:$0xff]
        %v364 = vld [vmem:[#allocation11 + $0x80] sm:$0xff]
        %v365 = vld [vmem:[#allocation11 + $0x88] sm:$0xff]
        %v366 = vld [vmem:[#allocation11 + $0x90] sm:$0xff]
        %v367 = vld [vmem:[#allocation11 + $0x98] sm:$0xff]
        %v368 = vld [vmem:[#allocation11 + $0xa0] sm:$0xff]
        %v369 = vld [vmem:[#allocation11 + $0xa8] sm:$0xff]
        %v370 = vld [vmem:[#allocation11 + $0xb0] sm:$0xff]
        %v371 = vld [vmem:[#allocation11 + $0xb8] sm:$0xff]
        %v372 = vld [vmem:[#allocation11 + $0xc0] sm:$0xff]
        %v373 = vld [vmem:[#allocation11 + $0xc8] sm:$0xff]
        %v374 = vld [vmem:[#allocation11 + $0xd0] sm:$0xff]
        %v375 = vld [vmem:[#allocation11 + $0xd8] sm:$0xff]
        %v376 = vld [vmem:[#allocation11 + $0xe0] sm:$0xff]
        %v377 = vld [vmem:[#allocation11 + $0xe8] sm:$0xff]
        %v378 = vld [vmem:[#allocation11 + $0xf0] sm:$0xff]
        %v379 = vld [vmem:[#allocation11 + $0xf8] sm:$0xff]
        %v380 = vld [vmem:[#allocation14] sm:$0xff]
        %v381 = vld [vmem:[#allocation14 + $0x8] sm:$0xff]
        %v382 = vld [vmem:[#allocation14 + $0x10] sm:$0xff]
        %v383 = vld [vmem:[#allocation14 + $0x18] sm:$0xff]
        %v384 = vld [vmem:[#allocation14 + $0x20] sm:$0xff]
        %v385 = vld [vmem:[#allocation14 + $0x28] sm:$0xff]
        %v386 = vld [vmem:[#allocation14 + $0x30] sm:$0xff]
        %v387 = vld [vmem:[#allocation14 + $0x38] sm:$0xff]
        %v388 = vld [vmem:[#allocation14 + $0x40] sm:$0xff]
        %v389 = vld [vmem:[#allocation14 + $0x48] sm:$0xff]
        %v390 = vld [vmem:[#allocation14 + $0x50] sm:$0xff]
        %v391 = vld [vmem:[#allocation14 + $0x58] sm:$0xff]
        %v392 = vld [vmem:[#allocation14 + $0x60] sm:$0xff]
        %v393 = vld [vmem:[#allocation14 + $0x68] sm:$0xff]
        %v394 = vld [vmem:[#allocation14 + $0x70] sm:$0xff]
        %v395 = vld [vmem:[#allocation14 + $0x78] sm:$0xff]
        %v396 = vld [vmem:[#allocation14 + $0x80] sm:$0xff]
        %v397 = vld [vmem:[#allocation14 + $0x88] sm:$0xff]
        %v398 = vld [vmem:[#allocation14 + $0x90] sm:$0xff]
        %v399 = vld [vmem:[#allocation14 + $0x98] sm:$0xff]
        %v400 = vld [vmem:[#allocation14 + $0xa0] sm:$0xff]
        %v401 = vld [vmem:[#allocation14 + $0xa8] sm:$0xff]
        %v402 = vld [vmem:[#allocation14 + $0xb0] sm:$0xff]
        %v403 = vld [vmem:[#allocation14 + $0xb8] sm:$0xff]
        %v404 = vld [vmem:[#allocation14 + $0xc0] sm:$0xff]
        %v405 = vld [vmem:[#allocation14 + $0xc8] sm:$0xff]
        %v406 = vld [vmem:[#allocation14 + $0xd0] sm:$0xff]
        %v407 = vld [vmem:[#allocation14 + $0xd8] sm:$0xff]
        %v408 = vld [vmem:[#allocation14 + $0xe0] sm:$0xff]
        %v409 = vld [vmem:[#allocation14 + $0xe8] sm:$0xff]
        %v410 = vld [vmem:[#allocation14 + $0xf0] sm:$0xff]
        %v411 = vld [vmem:[#allocation14 + $0xf8] sm:$0xff]
        %v412 = vld [vmem:[%s4] sm:$0xf]
        %v413 = vld [vmem:[#allocation2] sm:$0xff]
        %v414 = vld [vmem:[#allocation2 + $0x8] sm:$0xff]
        %v415 = vld [vmem:[#allocation3] sm:$0xff]
        %v416 = vld [vmem:[#allocation3 + $0x8] sm:$0xff]
        %s417 = smul.u32 0, 4
        %s418 = smul.addr %s417, 8
        %s419 = scalar_lea.vmem %s293, %s418 [#allocation9]
        %v420 = vld [vmem:[%s419] sm:$0xff]
        %v421 = vld [vmem:[%s419 + $0x8] sm:$0xff]
        %v422 = vld [vmem:[%s419 + $0x10] sm:$0xff]
        %v423 = vld [vmem:[%s419 + $0x18] sm:$0xff]
        %v424 = vld [vmem:[%s419 + $0x20] sm:$0xff]
        %v425 = vld [vmem:[%s419 + $0x28] sm:$0xff]
        %v426 = vld [vmem:[%s419 + $0x30] sm:$0xff]
        %v427 = vld [vmem:[%s419 + $0x38] sm:$0xff]
        %v428 = vpack.c.bf16 %v414, %v413
        %v461 = vunpack.c.l.b16 %v348
        %v462 = vunpack.c.h.b16 %v348
        %v463 = vunpack.c.l.b16 %v349
        %v464 = vunpack.c.h.b16 %v349
        %v465 = vunpack.c.l.b16 %v350
        %v466 = vunpack.c.h.b16 %v350
        %v467 = vunpack.c.l.b16 %v351
        %v468 = vunpack.c.h.b16 %v351
        %v469 = vunpack.c.l.b16 %v352
        %v470 = vunpack.c.h.b16 %v352
        %v471 = vunpack.c.l.b16 %v353
        %v472 = vunpack.c.h.b16 %v353
        %v473 = vunpack.c.l.b16 %v354
        %v474 = vunpack.c.h.b16 %v354
        %v475 = vunpack.c.l.b16 %v355
        %v476 = vunpack.c.h.b16 %v355
        %v477 = vunpack.c.l.b16 %v356
        %v478 = vunpack.c.h.b16 %v356
        %v479 = vunpack.c.l.b16 %v357
        %v480 = vunpack.c.h.b16 %v357
        %v481 = vunpack.c.l.b16 %v358
        %v482 = vunpack.c.h.b16 %v358
        %v483 = vunpack.c.l.b16 %v359
        %v484 = vunpack.c.h.b16 %v359
        %v485 = vunpack.c.l.b16 %v360
        %v486 = vunpack.c.h.b16 %v360
        %v487 = vunpack.c.l.b16 %v361
        %v488 = vunpack.c.h.b16 %v361
        %v489 = vunpack.c.l.b16 %v362
        %v490 = vunpack.c.h.b16 %v362
        %v491 = vunpack.c.l.b16 %v363
        %v492 = vunpack.c.h.b16 %v363
        %v493 = vunpack.c.l.b16 %v364
        %v494 = vunpack.c.h.b16 %v364
        %v495 = vunpack.c.l.b16 %v365
        %v496 = vunpack.c.h.b16 %v365
        %v497 = vunpack.c.l.b16 %v366
        %v498 = vunpack.c.h.b16 %v366
        %v499 = vunpack.c.l.b16 %v367
        %v500 = vunpack.c.h.b16 %v367
        %v501 = vunpack.c.l.b16 %v368
        %v502 = vunpack.c.h.b16 %v368
        %v503 = vunpack.c.l.b16 %v369
        %v504 = vunpack.c.h.b16 %v369
        %v505 = vunpack.c.l.b16 %v370
        %v506 = vunpack.c.h.b16 %v370
        %v507 = vunpack.c.l.b16 %v371
        %v508 = vunpack.c.h.b16 %v371
        %v509 = vunpack.c.l.b16 %v372
        %v510 = vunpack.c.h.b16 %v372
        %v511 = vunpack.c.l.b16 %v373
        %v512 = vunpack.c.h.b16 %v373
        %v513 = vunpack.c.l.b16 %v374
        %v514 = vunpack.c.h.b16 %v374
        %v515 = vunpack.c.l.b16 %v375
        %v516 = vunpack.c.h.b16 %v375
        %v517 = vunpack.c.l.b16 %v376
        %v518 = vunpack.c.h.b16 %v376
        %v519 = vunpack.c.l.b16 %v377
        %v520 = vunpack.c.h.b16 %v377
        %v521 = vunpack.c.l.b16 %v378
        %v522 = vunpack.c.h.b16 %v378
        %v523 = vunpack.c.l.b16 %v379
        %v524 = vunpack.c.h.b16 %v379
        %v525 = vpack.c.b16 %v465, %v461
        %v526 = vpack.c.b16 %v466, %v462
        %v527 = vpack.c.b16 %v467, %v463
        %v528 = vpack.c.b16 %v468, %v464
        %v529 = vpack.c.b16 %v473, %v469
        %v530 = vpack.c.b16 %v474, %v470
        %v531 = vpack.c.b16 %v475, %v471
        %v532 = vpack.c.b16 %v476, %v472
        %v533 = vpack.c.b16 %v481, %v477
        %v534 = vpack.c.b16 %v482, %v478
        %v535 = vpack.c.b16 %v483, %v479
        %v536 = vpack.c.b16 %v484, %v480
        %v537 = vpack.c.b16 %v489, %v485
        %v538 = vpack.c.b16 %v490, %v486
        %v539 = vpack.c.b16 %v491, %v487
        %v540 = vpack.c.b16 %v492, %v488
        %v541 = vpack.c.b16 %v497, %v493
        %v542 = vpack.c.b16 %v498, %v494
        %v543 = vpack.c.b16 %v499, %v495
        %v544 = vpack.c.b16 %v500, %v496
        %v545 = vpack.c.b16 %v505, %v501
        %v546 = vpack.c.b16 %v506, %v502
        %v547 = vpack.c.b16 %v507, %v503
        %v548 = vpack.c.b16 %v508, %v504
        %v549 = vpack.c.b16 %v513, %v509
        %v550 = vpack.c.b16 %v514, %v510
        %v551 = vpack.c.b16 %v515, %v511
        %v552 = vpack.c.b16 %v516, %v512
        %v553 = vpack.c.b16 %v521, %v517
        %v554 = vpack.c.b16 %v522, %v518
        %v555 = vpack.c.b16 %v523, %v519
        %v556 = vpack.c.b16 %v524, %v520
        %589 = vmatprep.subr.bf16.mxu0 %v526
        %590 = vmatpush1.bf16.msra.mxu0 %v525
        %591 = vmatprep.subr.bf16.mxu0 %v530
        %592 = vmatpush1.bf16.msra.mxu0 %v529
        %593 = vmatprep.subr.bf16.mxu0 %v534
        %594 = vmatpush1.bf16.msra.mxu0 %v533
        %595 = vmatprep.subr.bf16.mxu0 %v538
        %596 = vmatpush1.bf16.msra.mxu0 %v537
        %597 = vmatprep.subr.bf16.mxu0 %v542
        %598 = vmatpush1.bf16.msra.mxu0 %v541
        %599 = vmatprep.subr.bf16.mxu0 %v546
        %600 = vmatpush1.bf16.msra.mxu0 %v545
        %601 = vmatprep.subr.bf16.mxu0 %v550
        %602 = vmatpush1.bf16.msra.mxu0 %v549
        %603 = vmatprep.subr.bf16.mxu0 %v554
        %604 = vmatpush1.bf16.msra.mxu0 %v553
        %605 = vmatprep.subr.bf16.mxu0 0
        %606 = vmatpush1.bf16.msra.mxu0 0
        %607 = vmatprep.subr.bf16.mxu0 0
        %608 = vmatpush1.bf16.msra.mxu0 0
        %609 = vmatprep.subr.bf16.mxu0 0
        %610 = vmatpush1.bf16.msra.mxu0 0
        %611 = vmatprep.subr.bf16.mxu0 0
        %612 = vmatpush1.bf16.msra.mxu0 0
        %613 = vmatprep.subr.bf16.mxu0 0
        %614 = vmatpush1.bf16.msra.mxu0 0
        %615 = vmatprep.subr.bf16.mxu0 0
        %616 = vmatpush1.bf16.msra.mxu0 0
        %617 = vmatprep.subr.bf16.mxu0 0
        %618 = vmatpush1.bf16.msra.mxu0 0
        %619 = vmatprep.subr.bf16.mxu0 0
        %620 = vmatpush1.bf16.msra.mxu0 0
        %621 = vmatprep.mubr.bf16.mxu0 0
        %622 = vmatmul.mubr.bf16.gmra.mrb[0].mxu0 %v428
        %v623 = vpop.f32.mrb[0].mxu0
        %v624 = vadd.f32 0.0, %v623
        %v625 = vpop.f32.mrb[0].mxu0
        %v626 = vadd.f32 0.0, %v625
        %v627 = vpop.f32.mrb[0].mxu0
        %v628 = vadd.f32 0.0, %v627
        %v629 = vpop.f32.mrb[0].mxu0
        %v630 = vadd.f32 0.0, %v629
        %631 = vdwg.mxu0
        %632 = vmatprep.subr.bf16.mxu0 %v528
        %633 = vmatpush1.bf16.msra.mxu0 %v527
        %634 = vmatprep.subr.bf16.mxu0 %v532
        %635 = vmatpush1.bf16.msra.mxu0 %v531
        %636 = vmatprep.subr.bf16.mxu0 %v536
        %637 = vmatpush1.bf16.msra.mxu0 %v535
        %638 = vmatprep.subr.bf16.mxu0 %v540
        %639 = vmatpush1.bf16.msra.mxu0 %v539
        %640 = vmatprep.subr.bf16.mxu0 %v544
        %641 = vmatpush1.bf16.msra.mxu0 %v543
        %642 = vmatprep.subr.bf16.mxu0 %v548
        %643 = vmatpush1.bf16.msra.mxu0 %v547
        %644 = vmatprep.subr.bf16.mxu0 %v552
        %645 = vmatpush1.bf16.msra.mxu0 %v551
        %646 = vmatprep.subr.bf16.mxu0 %v556
        %647 = vmatpush1.bf16.msra.mxu0 %v555
        %648 = vmatprep.subr.bf16.mxu0 0
        %649 = vmatpush1.bf16.msra.mxu0 0
        %650 = vmatprep.subr.bf16.mxu0 0
        %651 = vmatpush1.bf16.msra.mxu0 0
        %652 = vmatprep.subr.bf16.mxu0 0
        %653 = vmatpush1.bf16.msra.mxu0 0
        %654 = vmatprep.subr.bf16.mxu0 0
        %655 = vmatpush1.bf16.msra.mxu0 0
        %656 = vmatprep.subr.bf16.mxu0 0
        %657 = vmatpush1.bf16.msra.mxu0 0
        %658 = vmatprep.subr.bf16.mxu0 0
        %659 = vmatpush1.bf16.msra.mxu0 0
        %660 = vmatprep.subr.bf16.mxu0 0
        %661 = vmatpush1.bf16.msra.mxu0 0
        %662 = vmatprep.subr.bf16.mxu0 0
        %663 = vmatpush1.bf16.msra.mxu0 0
        %664 = vmatprep.mubr.bf16.mxu0 0
        %665 = vmatmul.mubr.bf16.gmra.mrb[0].mxu0 %v428
        %v666 = vpop.f32.mrb[0].mxu0
        %v667 = vadd.f32 0.0, %v666
        %v668 = vpop.f32.mrb[0].mxu0
        %v669 = vadd.f32 0.0, %v668
        %v670 = vpop.f32.mrb[0].mxu0
        %v671 = vadd.f32 0.0, %v670
        %v672 = vpop.f32.mrb[0].mxu0
        %v673 = vadd.f32 0.0, %v672
        %674 = vdwg.mxu0
        %v675 = vadd.f32 %v420, %v624
        %v676 = vadd.f32 %v421, %v626
        %v677 = vadd.f32 %v422, %v667
        %v678 = vadd.f32 %v423, %v669
        %v679 = vadd.f32 %v424, %v628
        %v680 = vadd.f32 %v425, %v630
        %v681 = vadd.f32 %v426, %v671
        %v682 = vadd.f32 %v427, %v673
        %v683 = vxor.u32 %v675, 2147483648
        %v684 = vxor.u32 %v676, 2147483648
        %v685 = vxor.u32 %v677, 2147483648
        %v686 = vxor.u32 %v678, 2147483648
        %v687 = vxor.u32 %v679, 2147483648
        %v688 = vxor.u32 %v680, 2147483648
        %v689 = vxor.u32 %v681, 2147483648
        %v690 = vxor.u32 %v682, 2147483648
        %v691 = vmul.f32 %v683, 1.442695
        %v692 = vpow.pop %v691
        %v693 = vmul.f32 %v684, 1.442695
        %v694 = vpow.pop %v693
        %v695 = vmul.f32 %v685, 1.442695
        %v696 = vpow.pop %v695
        %v697 = vmul.f32 %v686, 1.442695
        %v698 = vpow.pop %v697
        %v699 = vmul.f32 %v687, 1.442695
        %v700 = vpow.pop %v699
        %v701 = vmul.f32 %v688, 1.442695
        %v702 = vpow.pop %v701
        %v703 = vmul.f32 %v689, 1.442695
        %v704 = vpow.pop %v703
        %v705 = vmul.f32 %v690, 1.442695
        %v706 = vpow.pop %v705
        %v707 = vadd.f32 %v692, 1.0
        %v708 = vadd.f32 %v694, 1.0
        %v709 = vadd.f32 %v696, 1.0
        %v710 = vadd.f32 %v698, 1.0
        %v711 = vadd.f32 %v700, 1.0
        %v712 = vadd.f32 %v702, 1.0
        %v713 = vadd.f32 %v704, 1.0
        %v714 = vadd.f32 %v706, 1.0
        %v715 = vrcp.pop %v707
        %v716 = vmul.f32 1.0, %v715
        %v717 = vrcp.pop %v708
        %v718 = vmul.f32 1.0, %v717
        %v719 = vrcp.pop %v709
        %v720 = vmul.f32 1.0, %v719
        %v721 = vrcp.pop %v710
        %v722 = vmul.f32 1.0, %v721
        %v723 = vrcp.pop %v711
        %v724 = vmul.f32 1.0, %v723
        %v725 = vrcp.pop %v712
        %v726 = vmul.f32 1.0, %v725
        %v727 = vrcp.pop %v713
        %v728 = vmul.f32 1.0, %v727
        %v729 = vrcp.pop %v714
        %v730 = vmul.f32 1.0, %v729
        %v731 = vmul.f32 %v720, 2.0
        %v732 = vmul.f32 %v728, 2.0
        %v733 = vsub.f32 %v731, 1.0
        %v734 = vsub.f32 %v732, 1.0
        %v735 = vmul.f32 %v718, %v415
        %v736 = vmul.f32 %v726, %v416
        %v737 = vmul.f32 %v716, %v733
        %v738 = vmul.f32 %v724, %v734
        %v739 = vadd.f32 %v735, %v737
        %v740 = vadd.f32 %v736, %v738
        %v741 = vtanh.pop %v739
        %v742 = vtanh.pop %v740
        %v743 = vmul.f32 %v722, %v741
        %v744 = vmul.f32 %v730, %v742
        %v745 = vpack.c.bf16 %v744, %v743
        %746 = vst [vmem:[#allocation6] sm:$0xff] %v745
        %s747 = smul.u32 2, 4
        %s748 = smul.addr %s747, 8
        %s749 = scalar_lea.vmem %s293, %s748 [#allocation9]
        %v750 = vld [vmem:[%s749] sm:$0xff]
        %v751 = vld [vmem:[%s749 + $0x8] sm:$0xff]
        %v752 = vld [vmem:[%s749 + $0x10] sm:$0xff]
        %v753 = vld [vmem:[%s749 + $0x18] sm:$0xff]
        %v754 = vld [vmem:[%s749 + $0x20] sm:$0xff]
        %v755 = vld [vmem:[%s749 + $0x28] sm:$0xff]
        %v756 = vld [vmem:[%s749 + $0x30] sm:$0xff]
        %v757 = vld [vmem:[%s749 + $0x38] sm:$0xff]
        %758 = vmatprep.subr.bf16.mxu0 %v526
        %759 = vmatpush1.bf16.msra.mxu0 %v525
        %760 = vmatprep.subr.bf16.mxu0 %v530
        %761 = vmatpush1.bf16.msra.mxu0 %v529
        %762 = vmatprep.subr.bf16.mxu0 %v534
        %763 = vmatpush1.bf16.msra.mxu0 %v533
        %764 = vmatprep.subr.bf16.mxu0 %v538
        %765 = vmatpush1.bf16.msra.mxu0 %v537
        %766 = vmatprep.subr.bf16.mxu0 %v542
        %767 = vmatpush1.bf16.msra.mxu0 %v541
        %768 = vmatprep.subr.bf16.mxu0 %v546
        %769 = vmatpush1.bf16.msra.mxu0 %v545
        %770 = vmatprep.subr.bf16.mxu0 %v550
        %771 = vmatpush1.bf16.msra.mxu0 %v549
        %772 = vmatprep.subr.bf16.mxu0 %v554
        %773 = vmatpush1.bf16.msra.mxu0 %v553
        %774 = vmatprep.subr.bf16.mxu0 0
        %775 = vmatpush1.bf16.msra.mxu0 0
        %776 = vmatprep.subr.bf16.mxu0 0
        %777 = vmatpush1.bf16.msra.mxu0 0
        %778 = vmatprep.subr.bf16.mxu0 0
        %779 = vmatpush1.bf16.msra.mxu0 0
        %780 = vmatprep.subr.bf16.mxu0 0
        %781 = vmatpush1.bf16.msra.mxu0 0
        %782 = vmatprep.subr.bf16.mxu0 0
        %783 = vmatpush1.bf16.msra.mxu0 0
        %784 = vmatprep.subr.bf16.mxu0 0
        %785 = vmatpush1.bf16.msra.mxu0 0
        %786 = vmatprep.subr.bf16.mxu0 0
        %787 = vmatpush1.bf16.msra.mxu0 0
        %788 = vmatprep.subr.bf16.mxu0 0
        %789 = vmatpush1.bf16.msra.mxu0 0
        %790 = vmatprep.mubr.bf16.mxu0 0
        %791 = vmatmul.mubr.bf16.gmra.mrb[0].mxu0 %v745
        %v792 = vpop.f32.mrb[0].mxu0
        %v793 = vadd.f32 0.0, %v792
        %v794 = vpop.f32.mrb[0].mxu0
        %v795 = vadd.f32 0.0, %v794
        %v796 = vpop.f32.mrb[0].mxu0
        %v797 = vadd.f32 0.0, %v796
        %v798 = vpop.f32.mrb[0].mxu0
        %v799 = vadd.f32 0.0, %v798
        %800 = vdwg.mxu0
        %801 = vmatprep.subr.bf16.mxu0 %v528
        %802 = vmatpush1.bf16.msra.mxu0 %v527
        %803 = vmatprep.subr.bf16.mxu0 %v532
        %804 = vmatpush1.bf16.msra.mxu0 %v531
        %805 = vmatprep.subr.bf16.mxu0 %v536
        %806 = vmatpush1.bf16.msra.mxu0 %v535
        %807 = vmatprep.subr.bf16.mxu0 %v540
        %808 = vmatpush1.bf16.msra.mxu0 %v539
        %809 = vmatprep.subr.bf16.mxu0 %v544
        %810 = vmatpush1.bf16.msra.mxu0 %v543
        %811 = vmatprep.subr.bf16.mxu0 %v548
        %812 = vmatpush1.bf16.msra.mxu0 %v547
        %813 = vmatprep.subr.bf16.mxu0 %v552
        %814 = vmatpush1.bf16.msra.mxu0 %v551
        %815 = vmatprep.subr.bf16.mxu0 %v556
        %816 = vmatpush1.bf16.msra.mxu0 %v555
        %817 = vmatprep.subr.bf16.mxu0 0
        %818 = vmatpush1.bf16.msra.mxu0 0
        %819 = vmatprep.subr.bf16.mxu0 0
        %820 = vmatpush1.bf16.msra.mxu0 0
        %821 = vmatprep.subr.bf16.mxu0 0
        %822 = vmatpush1.bf16.msra.mxu0 0
        %823 = vmatprep.subr.bf16.mxu0 0
        %824 = vmatpush1.bf16.msra.mxu0 0
        %825 = vmatprep.subr.bf16.mxu0 0
        %826 = vmatpush1.bf16.msra.mxu0 0
        %827 = vmatprep.subr.bf16.mxu0 0
        %828 = vmatpush1.bf16.msra.mxu0 0
        %829 = vmatprep.subr.bf16.mxu0 0
        %830 = vmatpush1.bf16.msra.mxu0 0
        %831 = vmatprep.subr.bf16.mxu0 0
        %832 = vmatpush1.bf16.msra.mxu0 0
        %833 = vmatprep.mubr.bf16.mxu0 0
        %834 = vmatmul.mubr.bf16.gmra.mrb[0].mxu0 %v745
        %v835 = vpop.f32.mrb[0].mxu0
        %v836 = vadd.f32 0.0, %v835
        %v837 = vpop.f32.mrb[0].mxu0
        %v838 = vadd.f32 0.0, %v837
        %v839 = vpop.f32.mrb[0].mxu0
        %v840 = vadd.f32 0.0, %v839
        %v841 = vpop.f32.mrb[0].mxu0
        %v842 = vadd.f32 0.0, %v841
        %843 = vdwg.mxu0
        %v844 = vadd.f32 %v750, %v793
        %v845 = vadd.f32 %v751, %v795
        %v846 = vadd.f32 %v752, %v836
        %v847 = vadd.f32 %v753, %v838
        %v848 = vadd.f32 %v754, %v797
        %v849 = vadd.f32 %v755, %v799
        %v850 = vadd.f32 %v756, %v840
        %v851 = vadd.f32 %v757, %v842
        %v852 = vxor.u32 %v844, 2147483648
        %v853 = vxor.u32 %v845, 2147483648
        %v854 = vxor.u32 %v846, 2147483648
        %v855 = vxor.u32 %v847, 2147483648
        %v856 = vxor.u32 %v848, 2147483648
        %v857 = vxor.u32 %v849, 2147483648
        %v858 = vxor.u32 %v850, 2147483648
        %v859 = vxor.u32 %v851, 2147483648
        %v860 = vmul.f32 %v852, 1.442695
        %v861 = vpow.pop %v860
        %v862 = vmul.f32 %v853, 1.442695
        %v863 = vpow.pop %v862
        %v864 = vmul.f32 %v854, 1.442695
        %v865 = vpow.pop %v864
        %v866 = vmul.f32 %v855, 1.442695
        %v867 = vpow.pop %v866
        %v868 = vmul.f32 %v856, 1.442695
        %v869 = vpow.pop %v868
        %v870 = vmul.f32 %v857, 1.442695
        %v871 = vpow.pop %v870
        %v872 = vmul.f32 %v858, 1.442695
        %v873 = vpow.pop %v872
        %v874 = vmul.f32 %v859, 1.442695
        %v875 = vpow.pop %v874
        %v876 = vadd.f32 %v861, 1.0
        %v877 = vadd.f32 %v863, 1.0
        %v878 = vadd.f32 %v865, 1.0
        %v879 = vadd.f32 %v867, 1.0
        %v880 = vadd.f32 %v869, 1.0
        %v881 = vadd.f32 %v871, 1.0
        %v882 = vadd.f32 %v873, 1.0
        %v883 = vadd.f32 %v875, 1.0
        %v884 = vrcp.pop %v876
        %v885 = vmul.f32 1.0, %v884
        %v886 = vrcp.pop %v877
        %v887 = vmul.f32 1.0, %v886
        %v888 = vrcp.pop %v878
        %v889 = vmul.f32 1.0, %v888
        %v890 = vrcp.pop %v879
        %v891 = vmul.f32 1.0, %v890
        %v892 = vrcp.pop %v880
        %v893 = vmul.f32 1.0, %v892
        %v894 = vrcp.pop %v881
        %v895 = vmul.f32 1.0, %v894
        %v896 = vrcp.pop %v882
        %v897 = vmul.f32 1.0, %v896
        %v898 = vrcp.pop %v883
        %v899 = vmul.f32 1.0, %v898
        %v900 = vmul.f32 %v889, 2.0
        %v901 = vmul.f32 %v897, 2.0
        %v902 = vsub.f32 %v900, 1.0
        %v903 = vsub.f32 %v901, 1.0
        %v904 = vmul.f32 %v887, %v739
        %v905 = vmul.f32 %v895, %v740
        %v906 = vmul.f32 %v885, %v902
        %v907 = vmul.f32 %v893, %v903
        %v908 = vadd.f32 %v904, %v906
        %v909 = vadd.f32 %v905, %v907
        %v910 = vtanh.pop %v908
        %v911 = vtanh.pop %v909
        %v912 = vmul.f32 %v891, %v910
        %v913 = vmul.f32 %v899, %v911
        %v914 = vpack.c.bf16 %v913, %v912
        %s915 = scalar_lea.vmem [#allocation6], 8
        %916 = vst [vmem:[%s915] sm:$0xff] %v914
        %s917 = smul.u32 4, 4
        %s918 = smul.addr %s917, 8
        %s919 = scalar_lea.vmem %s293, %s918 [#allocation9]
        %v920 = vld [vmem:[%s919] sm:$0xff]
        %v921 = vld [vmem:[%s919 + $0x8] sm:$0xff]
        %v922 = vld [vmem:[%s919 + $0x10] sm:$0xff]
        %v923 = vld [vmem:[%s919 + $0x18] sm:$0xff]
        %v924 = vld [vmem:[%s919 + $0x20] sm:$0xff]
        %v925 = vld [vmem:[%s919 + $0x28] sm:$0xff]
        %v926 = vld [vmem:[%s919 + $0x30] sm:$0xff]
        %v927 = vld [vmem:[%s919 + $0x38] sm:$0xff]
        %928 = vmatprep.subr.bf16.mxu0 %v526
        %929 = vmatpush1.bf16.msra.mxu0 %v525
        %930 = vmatprep.subr.bf16.mxu0 %v530
        %931 = vmatpush1.bf16.msra.mxu0 %v529
        %932 = vmatprep.subr.bf16.mxu0 %v534
        %933 = vmatpush1.bf16.msra.mxu0 %v533
        %934 = vmatprep.subr.bf16.mxu0 %v538
        %935 = vmatpush1.bf16.msra.mxu0 %v537
        %936 = vmatprep.subr.bf16.mxu0 %v542
        %937 = vmatpush1.bf16.msra.mxu0 %v541
        %938 = vmatprep.subr.bf16.mxu0 %v546
        %939 = vmatpush1.bf16.msra.mxu0 %v545
        %940 = vmatprep.subr.bf16.mxu0 %v550
        %941 = vmatpush1.bf16.msra.mxu0 %v549
        %942 = vmatprep.subr.bf16.mxu0 %v554
        %943 = vmatpush1.bf16.msra.mxu0 %v553
        %944 = vmatprep.subr.bf16.mxu0 0
        %945 = vmatpush1.bf16.msra.mxu0 0
        %946 = vmatprep.subr.bf16.mxu0 0
        %947 = vmatpush1.bf16.msra.mxu0 0
        %948 = vmatprep.subr.bf16.mxu0 0
        %949 = vmatpush1.bf16.msra.mxu0 0
        %950 = vmatprep.subr.bf16.mxu0 0
        %951 = vmatpush1.bf16.msra.mxu0 0
        %952 = vmatprep.subr.bf16.mxu0 0
        %953 = vmatpush1.bf16.msra.mxu0 0
        %954 = vmatprep.subr.bf16.mxu0 0
        %955 = vmatpush1.bf16.msra.mxu0 0
        %956 = vmatprep.subr.bf16.mxu0 0
        %957 = vmatpush1.bf16.msra.mxu0 0
        %958 = vmatprep.subr.bf16.mxu0 0
        %959 = vmatpush1.bf16.msra.mxu0 0
        %960 = vmatprep.mubr.bf16.mxu0 0
        %961 = vmatmul.mubr.bf16.gmra.mrb[0].mxu0 %v914
        %v962 = vpop.f32.mrb[0].mxu0
        %v963 = vadd.f32 0.0, %v962
        %v964 = vpop.f32.mrb[0].mxu0
        %v965 = vadd.f32 0.0, %v964
        %v966 = vpop.f32.mrb[0].mxu0
        %v967 = vadd.f32 0.0, %v966
        %v968 = vpop.f32.mrb[0].mxu0
        %v969 = vadd.f32 0.0, %v968
        %970 = vdwg.mxu0
        %971 = vmatprep.subr.bf16.mxu0 %v528
        %972 = vmatpush1.bf16.msra.mxu0 %v527
        %973 = vmatprep.subr.bf16.mxu0 %v532
        %974 = vmatpush1.bf16.msra.mxu0 %v531
        %975 = vmatprep.subr.bf16.mxu0 %v536
        %976 = vmatpush1.bf16.msra.mxu0 %v535
        %977 = vmatprep.subr.bf16.mxu0 %v540
        %978 = vmatpush1.bf16.msra.mxu0 %v539
        %979 = vmatprep.subr.bf16.mxu0 %v544
        %980 = vmatpush1.bf16.msra.mxu0 %v543
        %981 = vmatprep.subr.bf16.mxu0 %v548
        %982 = vmatpush1.bf16.msra.mxu0 %v547
        %983 = vmatprep.subr.bf16.mxu0 %v552
        %984 = vmatpush1.bf16.msra.mxu0 %v551
        %985 = vmatprep.subr.bf16.mxu0 %v556
        %986 = vmatpush1.bf16.msra.mxu0 %v555
        %987 = vmatprep.subr.bf16.mxu0 0
        %988 = vmatpush1.bf16.msra.mxu0 0
        %989 = vmatprep.subr.bf16.mxu0 0
        %990 = vmatpush1.bf16.msra.mxu0 0
        %991 = vmatprep.subr.bf16.mxu0 0
        %992 = vmatpush1.bf16.msra.mxu0 0
        %993 = vmatprep.subr.bf16.mxu0 0
        %994 = vmatpush1.bf16.msra.mxu0 0
        %995 = vmatprep.subr.bf16.mxu0 0
        %996 = vmatpush1.bf16.msra.mxu0 0
        %997 = vmatprep.subr.bf16.mxu0 0
        %998 = vmatpush1.bf16.msra.mxu0 0
        %999 = vmatprep.subr.bf16.mxu0 0
        %1000 = vmatpush1.bf16.msra.mxu0 0
        %1001 = vmatprep.subr.bf16.mxu0 0
        %1002 = vmatpush1.bf16.msra.mxu0 0
        %1003 = vmatprep.mubr.bf16.mxu0 0
        %1004 = vmatmul.mubr.bf16.gmra.mrb[0].mxu0 %v914
        %v1005 = vpop.f32.mrb[0].mxu0
        %v1006 = vadd.f32 0.0, %v1005
        %v1007 = vpop.f32.mrb[0].mxu0
        %v1008 = vadd.f32 0.0, %v1007
        %v1009 = vpop.f32.mrb[0].mxu0
        %v1010 = vadd.f32 0.0, %v1009
        %v1011 = vpop.f32.mrb[0].mxu0
        %v1012 = vadd.f32 0.0, %v1011
        %1013 = vdwg.mxu0
        %v1014 = vadd.f32 %v920, %v963
        %v1015 = vadd.f32 %v921, %v965
        %v1016 = vadd.f32 %v922, %v1006
        %v1017 = vadd.f32 %v923, %v1008
        %v1018 = vadd.f32 %v924, %v967
        %v1019 = vadd.f32 %v925, %v969
        %v1020 = vadd.f32 %v926, %v1010
        %v1021 = vadd.f32 %v927, %v1012
        %v1022 = vxor.u32 %v1014, 2147483648
        %v1023 = vxor.u32 %v1015, 2147483648
        %v1024 = vxor.u32 %v1016, 2147483648
        %v1025 = vxor.u32 %v1017, 2147483648
        %v1026 = vxor.u32 %v1018, 2147483648
        %v1027 = vxor.u32 %v1019, 2147483648
        %v1028 = vxor.u32 %v1020, 2147483648
        %v1029 = vxor.u32 %v1021, 2147483648
        %v1030 = vmul.f32 %v1022, 1.442695
        %v1031 = vpow.pop %v1030
        %v1032 = vmul.f32 %v1023, 1.442695
        %v1033 = vpow.pop %v1032
        %v1034 = vmul.f32 %v1024, 1.442695
        %v1035 = vpow.pop %v1034
        %v1036 = vmul.f32 %v1025, 1.442695
        %v1037 = vpow.pop %v1036
        %v1038 = vmul.f32 %v1026, 1.442695
        %v1039 = vpow.pop %v1038
        %v1040 = vmul.f32 %v1027, 1.442695
        %v1041 = vpow.pop %v1040
        %v1042 = vmul.f32 %v1028, 1.442695
        %v1043 = vpow.pop %v1042
        %v1044 = vmul.f32 %v1029, 1.442695
        %v1045 = vpow.pop %v1044
        %v1046 = vadd.f32 %v1031, 1.0
        %v1047 = vadd.f32 %v1033, 1.0
        %v1048 = vadd.f32 %v1035, 1.0
        %v1049 = vadd.f32 %v1037, 1.0
        %v1050 = vadd.f32 %v1039, 1.0
        %v1051 = vadd.f32 %v1041, 1.0
        %v1052 = vadd.f32 %v1043, 1.0
        %v1053 = vadd.f32 %v1045, 1.0
        %v1054 = vrcp.pop %v1046
        %v1055 = vmul.f32 1.0, %v1054
        %v1056 = vrcp.pop %v1047
        %v1057 = vmul.f32 1.0, %v1056
        %v1058 = vrcp.pop %v1048
        %v1059 = vmul.f32 1.0, %v1058
        %v1060 = vrcp.pop %v1049
        %v1061 = vmul.f32 1.0, %v1060
        %v1062 = vrcp.pop %v1050
        %v1063 = vmul.f32 1.0, %v1062
        %v1064 = vrcp.pop %v1051
        %v1065 = vmul.f32 1.0, %v1064
        %v1066 = vrcp.pop %v1052
        %v1067 = vmul.f32 1.0, %v1066
        %v1068 = vrcp.pop %v1053
        %v1069 = vmul.f32 1.0, %v1068
        %v1070 = vmul.f32 %v1059, 2.0
        %v1071 = vmul.f32 %v1067, 2.0
        %v1072 = vsub.f32 %v1070, 1.0
        %v1073 = vsub.f32 %v1071, 1.0
        %v1074 = vmul.f32 %v1057, %v908
        %v1075 = vmul.f32 %v1065, %v909
        %v1076 = vmul.f32 %v1055, %v1072
        %v1077 = vmul.f32 %v1063, %v1073
        %v1078 = vadd.f32 %v1074, %v1076
        %v1079 = vadd.f32 %v1075, %v1077
        %v1080 = vtanh.pop %v1078
        %v1081 = vtanh.pop %v1079
        %v1082 = vmul.f32 %v1061, %v1080
        %v1083 = vmul.f32 %v1069, %v1081
        %v1084 = vpack.c.bf16 %v1083, %v1082
        %s1085 = scalar_lea.vmem [#allocation6], 16
        %1086 = vst [vmem:[%s1085] sm:$0xff] %v1084
        %s1087 = smul.u32 6, 4
        %s1088 = smul.addr %s1087, 8
        %s1089 = scalar_lea.vmem %s293, %s1088 [#allocation9]
        %v1090 = vld [vmem:[%s1089] sm:$0xff]
        %v1091 = vld [vmem:[%s1089 + $0x8] sm:$0xff]
        %v1092 = vld [vmem:[%s1089 + $0x10] sm:$0xff]
        %v1093 = vld [vmem:[%s1089 + $0x18] sm:$0xff]
        %v1094 = vld [vmem:[%s1089 + $0x20] sm:$0xff]
        %v1095 = vld [vmem:[%s1089 + $0x28] sm:$0xff]
        %v1096 = vld [vmem:[%s1089 + $0x30] sm:$0xff]
        %v1097 = vld [vmem:[%s1089 + $0x38] sm:$0xff]
        %1098 = vmatprep.subr.bf16.mxu0 %v526
        %1099 = vmatpush1.bf16.msra.mxu0 %v525
        %1100 = vmatprep.subr.bf16.mxu0 %v530
        %1101 = vmatpush1.bf16.msra.mxu0 %v529
        %1102 = vmatprep.subr.bf16.mxu0 %v534
        %1103 = vmatpush1.bf16.msra.mxu0 %v533
        %1104 = vmatprep.subr.bf16.mxu0 %v538
        %1105 = vmatpush1.bf16.msra.mxu0 %v537
        %1106 = vmatprep.subr.bf16.mxu0 %v542
        %1107 = vmatpush1.bf16.msra.mxu0 %v541
        %1108 = vmatprep.subr.bf16.mxu0 %v546
        %1109 = vmatpush1.bf16.msra.mxu0 %v545
        %1110 = vmatprep.subr.bf16.mxu0 %v550
        %1111 = vmatpush1.bf16.msra.mxu0 %v549
        %1112 = vmatprep.subr.bf16.mxu0 %v554
        %1113 = vmatpush1.bf16.msra.mxu0 %v553
        %1114 = vmatprep.subr.bf16.mxu0 0
        %1115 = vmatpush1.bf16.msra.mxu0 0
        %1116 = vmatprep.subr.bf16.mxu0 0
        %1117 = vmatpush1.bf16.msra.mxu0 0
        %1118 = vmatprep.subr.bf16.mxu0 0
        %1119 = vmatpush1.bf16.msra.mxu0 0
        %1120 = vmatprep.subr.bf16.mxu0 0
        %1121 = vmatpush1.bf16.msra.mxu0 0
        %1122 = vmatprep.subr.bf16.mxu0 0
        %1123 = vmatpush1.bf16.msra.mxu0 0
        %1124 = vmatprep.subr.bf16.mxu0 0
        %1125 = vmatpush1.bf16.msra.mxu0 0
        %1126 = vmatprep.subr.bf16.mxu0 0
        %1127 = vmatpush1.bf16.msra.mxu0 0
        %1128 = vmatprep.subr.bf16.mxu0 0
        %1129 = vmatpush1.bf16.msra.mxu0 0
        %1130 = vmatprep.mubr.bf16.mxu0 0
        %1131 = vmatmul.mubr.bf16.gmra.mrb[0].mxu0 %v1084
        %v1132 = vpop.f32.mrb[0].mxu0
        %v1133 = vadd.f32 0.0, %v1132
        %v1134 = vpop.f32.mrb[0].mxu0
        %v1135 = vadd.f32 0.0, %v1134
        %v1136 = vpop.f32.mrb[0].mxu0
        %v1137 = vadd.f32 0.0, %v1136
        %v1138 = vpop.f32.mrb[0].mxu0
        %v1139 = vadd.f32 0.0, %v1138
        %1140 = vdwg.mxu0
        %1141 = vmatprep.subr.bf16.mxu0 %v528
        %1142 = vmatpush1.bf16.msra.mxu0 %v527
        %1143 = vmatprep.subr.bf16.mxu0 %v532
        %1144 = vmatpush1.bf16.msra.mxu0 %v531
        %1145 = vmatprep.subr.bf16.mxu0 %v536
        %1146 = vmatpush1.bf16.msra.mxu0 %v535
        %1147 = vmatprep.subr.bf16.mxu0 %v540
        %1148 = vmatpush1.bf16.msra.mxu0 %v539
        %1149 = vmatprep.subr.bf16.mxu0 %v544
        %1150 = vmatpush1.bf16.msra.mxu0 %v543
        %1151 = vmatprep.subr.bf16.mxu0 %v548
        %1152 = vmatpush1.bf16.msra.mxu0 %v547
        %1153 = vmatprep.subr.bf16.mxu0 %v552
        %1154 = vmatpush1.bf16.msra.mxu0 %v551
        %1155 = vmatprep.subr.bf16.mxu0 %v556
        %1156 = vmatpush1.bf16.msra.mxu0 %v555
        %1157 = vmatprep.subr.bf16.mxu0 0
        %1158 = vmatpush1.bf16.msra.mxu0 0
        %1159 = vmatprep.subr.bf16.mxu0 0
        %1160 = vmatpush1.bf16.msra.mxu0 0
        %1161 = vmatprep.subr.bf16.mxu0 0
        %1162 = vmatpush1.bf16.msra.mxu0 0
        %1163 = vmatprep.subr.bf16.mxu0 0
        %1164 = vmatpush1.bf16.msra.mxu0 0
        %1165 = vmatprep.subr.bf16.mxu0 0
        %1166 = vmatpush1.bf16.msra.mxu0 0
        %1167 = vmatprep.subr.bf16.mxu0 0
        %1168 = vmatpush1.bf16.msra.mxu0 0
        %1169 = vmatprep.subr.bf16.mxu0 0
        %1170 = vmatpush1.bf16.msra.mxu0 0
        %1171 = vmatprep.subr.bf16.mxu0 0
        %1172 = vmatpush1.bf16.msra.mxu0 0
        %1173 = vmatprep.mubr.bf16.mxu0 0
        %1174 = vmatmul.mubr.bf16.gmra.mrb[0].mxu0 %v1084
        %v1175 = vpop.f32.mrb[0].mxu0
        %v1176 = vadd.f32 0.0, %v1175
        %v1177 = vpop.f32.mrb[0].mxu0
        %v1178 = vadd.f32 0.0, %v1177
        %v1179 = vpop.f32.mrb[0].mxu0
        %v1180 = vadd.f32 0.0, %v1179
        %v1181 = vpop.f32.mrb[0].mxu0
        %v1182 = vadd.f32 0.0, %v1181
        %1183 = vdwg.mxu0
        %v1184 = vadd.f32 %v1090, %v1133
        %v1185 = vadd.f32 %v1091, %v1135
        %v1186 = vadd.f32 %v1092, %v1176
        %v1187 = vadd.f32 %v1093, %v1178
        %v1188 = vadd.f32 %v1094, %v1137
        %v1189 = vadd.f32 %v1095, %v1139
        %v1190 = vadd.f32 %v1096, %v1180
        %v1191 = vadd.f32 %v1097, %v1182
        %v1192 = vxor.u32 %v1184, 2147483648
        %v1193 = vxor.u32 %v1185, 2147483648
        %v1194 = vxor.u32 %v1186, 2147483648
        %v1195 = vxor.u32 %v1187, 2147483648
        %v1196 = vxor.u32 %v1188, 2147483648
        %v1197 = vxor.u32 %v1189, 2147483648
        %v1198 = vxor.u32 %v1190, 2147483648
        %v1199 = vxor.u32 %v1191, 2147483648
        %v1200 = vmul.f32 %v1192, 1.442695
        %v1201 = vpow.pop %v1200
        %v1202 = vmul.f32 %v1193, 1.442695
        %v1203 = vpow.pop %v1202
        %v1204 = vmul.f32 %v1194, 1.442695
        %v1205 = vpow.pop %v1204
        %v1206 = vmul.f32 %v1195, 1.442695
        %v1207 = vpow.pop %v1206
        %v1208 = vmul.f32 %v1196, 1.442695
        %v1209 = vpow.pop %v1208
        %v1210 = vmul.f32 %v1197, 1.442695
        %v1211 = vpow.pop %v1210
        %v1212 = vmul.f32 %v1198, 1.442695
        %v1213 = vpow.pop %v1212
        %v1214 = vmul.f32 %v1199, 1.442695
        %v1215 = vpow.pop %v1214
        %v1216 = vadd.f32 %v1201, 1.0
        %v1217 = vadd.f32 %v1203, 1.0
        %v1218 = vadd.f32 %v1205, 1.0
        %v1219 = vadd.f32 %v1207, 1.0
        %v1220 = vadd.f32 %v1209, 1.0
        %v1221 = vadd.f32 %v1211, 1.0
        %v1222 = vadd.f32 %v1213, 1.0
        %v1223 = vadd.f32 %v1215, 1.0
        %v1224 = vrcp.pop %v1216
        %v1225 = vmul.f32 1.0, %v1224
        %v1226 = vrcp.pop %v1217
        %v1227 = vmul.f32 1.0, %v1226
        %v1228 = vrcp.pop %v1218
        %v1229 = vmul.f32 1.0, %v1228
        %v1230 = vrcp.pop %v1219
        %v1231 = vmul.f32 1.0, %v1230
        %v1232 = vrcp.pop %v1220
        %v1233 = vmul.f32 1.0, %v1232
        %v1234 = vrcp.pop %v1221
        %v1235 = vmul.f32 1.0, %v1234
        %v1236 = vrcp.pop %v1222
        %v1237 = vmul.f32 1.0, %v1236
        %v1238 = vrcp.pop %v1223
        %v1239 = vmul.f32 1.0, %v1238
        %v1240 = vmul.f32 %v1229, 2.0
        %v1241 = vmul.f32 %v1237, 2.0
        %v1242 = vsub.f32 %v1240, 1.0
        %v1243 = vsub.f32 %v1241, 1.0
        %v1244 = vmul.f32 %v1227, %v1078
        %v1245 = vmul.f32 %v1235, %v1079
        %v1246 = vmul.f32 %v1225, %v1242
        %v1247 = vmul.f32 %v1233, %v1243
        %v1248 = vadd.f32 %v1244, %v1246
        %v1249 = vadd.f32 %v1245, %v1247
        %v1250 = vtanh.pop %v1248
        %v1251 = vtanh.pop %v1249
        %v1252 = vmul.f32 %v1231, %v1250
        %v1253 = vmul.f32 %v1239, %v1251
        %v1254 = vpack.c.bf16 %v1253, %v1252
        %s1255 = scalar_lea.vmem [#allocation6], 24
        %1256 = vst [vmem:[%s1255] sm:$0xff] %v1254
        %1257 = vst [vmem:[#allocation2] sm:$0xff] %v1252
        %1258 = vst [vmem:[#allocation2 + $0x8] sm:$0xff] %v1253
        %1259 = vst [vmem:[#allocation3] sm:$0xff] %v1248
        %1260 = vst [vmem:[#allocation3 + $0x8] sm:$0xff] %v1249
        %v1261 = vld [vmem:[#allocation6] sm:$0xff]
        %v1262 = vld [vmem:[#allocation6 + $0x8] sm:$0xff]
        %v1263 = vld [vmem:[#allocation6 + $0x10] sm:$0xff]
        %v1264 = vld [vmem:[#allocation6 + $0x18] sm:$0xff]
        %v1265 = vld [vmem:[#allocation13] sm:$0xff]
        %v1266 = vld [vmem:[#allocation13 + $0x8] sm:$0xff]
        %v1267 = vld [vmem:[#allocation13 + $0x10] sm:$0xff]
        %v1268 = vld [vmem:[#allocation13 + $0x18] sm:$0xff]
        %v1269 = vld [vmem:[#allocation13 + $0x20] sm:$0xff]
        %v1270 = vld [vmem:[#allocation13 + $0x28] sm:$0xff]
        %v1271 = vld [vmem:[#allocation13 + $0x30] sm:$0xff]
        %v1272 = vld [vmem:[#allocation13 + $0x38] sm:$0xff]
        %v1273 = vld [vmem:[#allocation13 + $0x40] sm:$0xff]
        %v1274 = vld [vmem:[#allocation13 + $0x48] sm:$0xff]
        %v1275 = vld [vmem:[#allocation13 + $0x50] sm:$0xff]
        %v1276 = vld [vmem:[#allocation13 + $0x58] sm:$0xff]
        %v1277 = vld [vmem:[#allocation13 + $0x60] sm:$0xff]
        %v1278 = vld [vmem:[#allocation13 + $0x68] sm:$0xff]
        %v1279 = vld [vmem:[#allocation13 + $0x70] sm:$0xff]
        %v1280 = vld [vmem:[#allocation13 + $0x78] sm:$0xff]
        %v1281 = vld [vmem:[#allocation13 + $0x80] sm:$0xff]
        %v1282 = vld [vmem:[#allocation13 + $0x88] sm:$0xff]
        %v1283 = vld [vmem:[#allocation13 + $0x90] sm:$0xff]
        %v1284 = vld [vmem:[#allocation13 + $0x98] sm:$0xff]
        %v1285 = vld [vmem:[#allocation13 + $0xa0] sm:$0xff]
        %v1286 = vld [vmem:[#allocation13 + $0xa8] sm:$0xff]
        %v1287 = vld [vmem:[#allocation13 + $0xb0] sm:$0xff]
        %v1288 = vld [vmem:[#allocation13 + $0xb8] sm:$0xff]
        %v1289 = vld [vmem:[#allocation13 + $0xc0] sm:$0xff]
        %v1290 = vld [vmem:[#allocation13 + $0xc8] sm:$0xff]
        %v1291 = vld [vmem:[#allocation13 + $0xd0] sm:$0xff]
        %v1292 = vld [vmem:[#allocation13 + $0xd8] sm:$0xff]
        %v1293 = vld [vmem:[#allocation13 + $0xe0] sm:$0xff]
        %v1294 = vld [vmem:[#allocation13 + $0xe8] sm:$0xff]
        %v1295 = vld [vmem:[#allocation13 + $0xf0] sm:$0xff]
        %v1296 = vld [vmem:[#allocation13 + $0xf8] sm:$0xff]
        %v1298 = vlaneseq
        %v1299 = vshrl.u32 %v1298, 7
        %v1300 = vsub.s32 0, %v1299
        %v1301 = vrot.slane %v412, %v1300
        %v1302 = vlaneseq
        %v1303 = vshrl.u32 %v1302, 7
        %v1304 = vsub.s32 1, %v1303
        %v1305 = vrot.slane %v412, %v1304
        %v1306 = vlaneseq
        %v1307 = vshrl.u32 %v1306, 7
        %v1308 = vsub.s32 2, %v1307
        %v1309 = vrot.slane %v412, %v1308
        %v1310 = vlaneseq
        %v1311 = vshrl.u32 %v1310, 7
        %v1312 = vsub.s32 3, %v1311
        %v1313 = vrot.slane %v412, %v1312
        %v1350 = vunpack.c.l.b16 %v1265
        %v1351 = vunpack.c.h.b16 %v1265
        %v1352 = vunpack.c.l.b16 %v1266
        %v1353 = vunpack.c.h.b16 %v1266
        %v1354 = vunpack.c.l.b16 %v1267
        %v1355 = vunpack.c.h.b16 %v1267
        %v1356 = vunpack.c.l.b16 %v1268
        %v1357 = vunpack.c.h.b16 %v1268
        %v1358 = vunpack.c.l.b16 %v1269
        %v1359 = vunpack.c.h.b16 %v1269
        %v1360 = vunpack.c.l.b16 %v1270
        %v1361 = vunpack.c.h.b16 %v1270
        %v1362 = vunpack.c.l.b16 %v1271
        %v1363 = vunpack.c.h.b16 %v1271
        %v1364 = vunpack.c.l.b16 %v1272
        %v1365 = vunpack.c.h.b16 %v1272
        %v1366 = vunpack.c.l.b16 %v1273
        %v1367 = vunpack.c.h.b16 %v1273
        %v1368 = vunpack.c.l.b16 %v1274
        %v1369 = vunpack.c.h.b16 %v1274
        %v1370 = vunpack.c.l.b16 %v1275
        %v1371 = vunpack.c.h.b16 %v1275
        %v1372 = vunpack.c.l.b16 %v1276
        %v1373 = vunpack.c.h.b16 %v1276
        %v1374 = vunpack.c.l.b16 %v1277
        %v1375 = vunpack.c.h.b16 %v1277
        %v1376 = vunpack.c.l.b16 %v1278
        %v1377 = vunpack.c.h.b16 %v1278
        %v1378 = vunpack.c.l.b16 %v1279
        %v1379 = vunpack.c.h.b16 %v1279
        %v1380 = vunpack.c.l.b16 %v1280
        %v1381 = vunpack.c.h.b16 %v1280
        %v1382 = vunpack.c.l.b16 %v1281
        %v1383 = vunpack.c.h.b16 %v1281
        %v1384 = vunpack.c.l.b16 %v1282
        %v1385 = vunpack.c.h.b16 %v1282
        %v1386 = vunpack.c.l.b16 %v1283
        %v1387 = vunpack.c.h.b16 %v1283
        %v1388 = vunpack.c.l.b16 %v1284
        %v1389 = vunpack.c.h.b16 %v1284
        %v1390 = vunpack.c.l.b16 %v1285
        %v1391 = vunpack.c.h.b16 %v1285
        %v1392 = vunpack.c.l.b16 %v1286
        %v1393 = vunpack.c.h.b16 %v1286
        %v1394 = vunpack.c.l.b16 %v1287
        %v1395 = vunpack.c.h.b16 %v1287
        %v1396 = vunpack.c.l.b16 %v1288
        %v1397 = vunpack.c.h.b16 %v1288
        %v1398 = vunpack.c.l.b16 %v1289
        %v1399 = vunpack.c.h.b16 %v1289
        %v1400 = vunpack.c.l.b16 %v1290
        %v1401 = vunpack.c.h.b16 %v1290
        %v1402 = vunpack.c.l.b16 %v1291
        %v1403 = vunpack.c.h.b16 %v1291
        %v1404 = vunpack.c.l.b16 %v1292
        %v1405 = vunpack.c.h.b16 %v1292
        %v1406 = vunpack.c.l.b16 %v1293
        %v1407 = vunpack.c.h.b16 %v1293
        %v1408 = vunpack.c.l.b16 %v1294
        %v1409 = vunpack.c.h.b16 %v1294
        %v1410 = vunpack.c.l.b16 %v1295
        %v1411 = vunpack.c.h.b16 %v1295
        %v1412 = vunpack.c.l.b16 %v1296
        %v1413 = vunpack.c.h.b16 %v1296
        %v1414 = vpack.c.b16 %v1354, %v1350
        %v1415 = vpack.c.b16 %v1355, %v1351
        %v1416 = vpack.c.b16 %v1356, %v1352
        %v1417 = vpack.c.b16 %v1357, %v1353
        %v1418 = vpack.c.b16 %v1362, %v1358
        %v1419 = vpack.c.b16 %v1363, %v1359
        %v1420 = vpack.c.b16 %v1364, %v1360
        %v1421 = vpack.c.b16 %v1365, %v1361
        %v1422 = vpack.c.b16 %v1370, %v1366
        %v1423 = vpack.c.b16 %v1371, %v1367
        %v1424 = vpack.c.b16 %v1372, %v1368
        %v1425 = vpack.c.b16 %v1373, %v1369
        %v1426 = vpack.c.b16 %v1378, %v1374
        %v1427 = vpack.c.b16 %v1379, %v1375
        %v1428 = vpack.c.b16 %v1380, %v1376
        %v1429 = vpack.c.b16 %v1381, %v1377
        %v1430 = vpack.c.b16 %v1386, %v1382
        %v1431 = vpack.c.b16 %v1387, %v1383
        %v1432 = vpack.c.b16 %v1388, %v1384
        %v1433 = vpack.c.b16 %v1389, %v1385
        %v1434 = vpack.c.b16 %v1394, %v1390
        %v1435 = vpack.c.b16 %v1395, %v1391
        %v1436 = vpack.c.b16 %v1396, %v1392
        %v1437 = vpack.c.b16 %v1397, %v1393
        %v1438 = vpack.c.b16 %v1402, %v1398
        %v1439 = vpack.c.b16 %v1403, %v1399
        %v1440 = vpack.c.b16 %v1404, %v1400
        %v1441 = vpack.c.b16 %v1405, %v1401
        %v1442 = vpack.c.b16 %v1410, %v1406
        %v1443 = vpack.c.b16 %v1411, %v1407
        %v1444 = vpack.c.b16 %v1412, %v1408
        %v1445 = vpack.c.b16 %v1413, %v1409
        %1478 = vmatprep.subr.bf16.mxu0 %v1415
        %1479 = vmatpush1.bf16.msra.mxu0 %v1414
        %1480 = vmatprep.subr.bf16.mxu0 %v1419
        %1481 = vmatpush1.bf16.msra.mxu0 %v1418
        %1482 = vmatprep.subr.bf16.mxu0 %v1423
        %1483 = vmatpush1.bf16.msra.mxu0 %v1422
        %1484 = vmatprep.subr.bf16.mxu0 %v1427
        %1485 = vmatpush1.bf16.msra.mxu0 %v1426
        %1486 = vmatprep.subr.bf16.mxu0 %v1431
        %1487 = vmatpush1.bf16.msra.mxu0 %v1430
        %1488 = vmatprep.subr.bf16.mxu0 %v1435
        %1489 = vmatpush1.bf16.msra.mxu0 %v1434
        %1490 = vmatprep.subr.bf16.mxu0 %v1439
        %1491 = vmatpush1.bf16.msra.mxu0 %v1438
        %1492 = vmatprep.subr.bf16.mxu0 %v1443
        %1493 = vmatpush1.bf16.msra.mxu0 %v1442
        %1494 = vmatprep.subr.bf16.mxu0 0
        %1495 = vmatpush1.bf16.msra.mxu0 0
        %1496 = vmatprep.subr.bf16.mxu0 0
        %1497 = vmatpush1.bf16.msra.mxu0 0
        %1498 = vmatprep.subr.bf16.mxu0 0
        %1499 = vmatpush1.bf16.msra.mxu0 0
        %1500 = vmatprep.subr.bf16.mxu0 0
        %1501 = vmatpush1.bf16.msra.mxu0 0
        %1502 = vmatprep.subr.bf16.mxu0 0
        %1503 = vmatpush1.bf16.msra.mxu0 0
        %1504 = vmatprep.subr.bf16.mxu0 0
        %1505 = vmatpush1.bf16.msra.mxu0 0
        %1506 = vmatprep.subr.bf16.mxu0 0
        %1507 = vmatpush1.bf16.msra.mxu0 0
        %1508 = vmatprep.subr.bf16.mxu0 0
        %1509 = vmatpush1.bf16.msra.mxu0 0
        %1510 = vmatprep.mubr.bf16.mxu0 0
        %1511 = vmatmul.mubr.bf16.gmra.mrb[0].mxu0 %v1261
        %v1512 = vpop.f32.mrb[0].mxu0
        %v1513 = vadd.f32 %v1301, %v1512
        %v1514 = vpop.f32.mrb[0].mxu0
        %v1515 = vadd.f32 %v1305, %v1514
        %v1516 = vpop.f32.mrb[0].mxu0
        %v1517 = vadd.f32 %v1301, %v1516
        %v1518 = vpop.f32.mrb[0].mxu0
        %v1519 = vadd.f32 %v1305, %v1518
        %1520 = vmatprep.mubr.bf16.mxu0 0
        %1521 = vmatmul.mubr.bf16.gmra.mrb[0].mxu0 %v1262
        %v1522 = vpop.f32.mrb[0].mxu0
        %v1523 = vadd.f32 %v1301, %v1522
        %v1524 = vpop.f32.mrb[0].mxu0
        %v1525 = vadd.f32 %v1305, %v1524
        %v1526 = vpop.f32.mrb[0].mxu0
        %v1527 = vadd.f32 %v1301, %v1526
        %v1528 = vpop.f32.mrb[0].mxu0
        %v1529 = vadd.f32 %v1305, %v1528
        %1530 = vmatprep.mubr.bf16.mxu0 0
        %1531 = vmatmul.mubr.bf16.gmra.mrb[0].mxu0 %v1263
        %v1532 = vpop.f32.mrb[0].mxu0
        %v1533 = vadd.f32 %v1301, %v1532
        %v1534 = vpop.f32.mrb[0].mxu0
        %v1535 = vadd.f32 %v1305, %v1534
        %v1536 = vpop.f32.mrb[0].mxu0
        %v1537 = vadd.f32 %v1301, %v1536
        %v1538 = vpop.f32.mrb[0].mxu0
        %v1539 = vadd.f32 %v1305, %v1538
        %1540 = vmatprep.mubr.bf16.mxu0 0
        %1541 = vmatmul.mubr.bf16.gmra.mrb[0].mxu0 %v1264
        %v1542 = vpop.f32.mrb[0].mxu0
        %v1543 = vadd.f32 %v1301, %v1542
        %v1544 = vpop.f32.mrb[0].mxu0
        %v1545 = vadd.f32 %v1305, %v1544
        %v1546 = vpop.f32.mrb[0].mxu0
        %v1547 = vadd.f32 %v1301, %v1546
        %v1548 = vpop.f32.mrb[0].mxu0
        %v1549 = vadd.f32 %v1305, %v1548
        %1550 = vdwg.mxu0
        %1551 = vmatprep.subr.bf16.mxu0 %v1417
        %1552 = vmatpush1.bf16.msra.mxu0 %v1416
        %1553 = vmatprep.subr.bf16.mxu0 %v1421
        %1554 = vmatpush1.bf16.msra.mxu0 %v1420
        %1555 = vmatprep.subr.bf16.mxu0 %v1425
        %1556 = vmatpush1.bf16.msra.mxu0 %v1424
        %1557 = vmatprep.subr.bf16.mxu0 %v1429
        %1558 = vmatpush1.bf16.msra.mxu0 %v1428
        %1559 = vmatprep.subr.bf16.mxu0 %v1433
        %1560 = vmatpush1.bf16.msra.mxu0 %v1432
        %1561 = vmatprep.subr.bf16.mxu0 %v1437
        %1562 = vmatpush1.bf16.msra.mxu0 %v1436
        %1563 = vmatprep.subr.bf16.mxu0 %v1441
        %1564 = vmatpush1.bf16.msra.mxu0 %v1440
        %1565 = vmatprep.subr.bf16.mxu0 %v1445
        %1566 = vmatpush1.bf16.msra.mxu0 %v1444
        %1567 = vmatprep.subr.bf16.mxu0 0
        %1568 = vmatpush1.bf16.msra.mxu0 0
        %1569 = vmatprep.subr.bf16.mxu0 0
        %1570 = vmatpush1.bf16.msra.mxu0 0
        %1571 = vmatprep.subr.bf16.mxu0 0
        %1572 = vmatpush1.bf16.msra.mxu0 0
        %1573 = vmatprep.subr.bf16.mxu0 0
        %1574 = vmatpush1.bf16.msra.mxu0 0
        %1575 = vmatprep.subr.bf16.mxu0 0
        %1576 = vmatpush1.bf16.msra.mxu0 0
        %1577 = vmatprep.subr.bf16.mxu0 0
        %1578 = vmatpush1.bf16.msra.mxu0 0
        %1579 = vmatprep.subr.bf16.mxu0 0
        %1580 = vmatpush1.bf16.msra.mxu0 0
        %1581 = vmatprep.subr.bf16.mxu0 0
        %1582 = vmatpush1.bf16.msra.mxu0 0
        %1583 = vmatprep.mubr.bf16.mxu0 0
        %1584 = vmatmul.mubr.bf16.gmra.mrb[0].mxu0 %v1261
        %v1585 = vpop.f32.mrb[0].mxu0
        %v1586 = vadd.f32 %v1309, %v1585
        %v1587 = vpop.f32.mrb[0].mxu0
        %v1588 = vadd.f32 %v1313, %v1587
        %v1589 = vpop.f32.mrb[0].mxu0
        %v1590 = vadd.f32 %v1309, %v1589
        %v1591 = vpop.f32.mrb[0].mxu0
        %v1592 = vadd.f32 %v1313, %v1591
        %1593 = vmatprep.mubr.bf16.mxu0 0
        %1594 = vmatmul.mubr.bf16.gmra.mrb[0].mxu0 %v1262
        %v1595 = vpop.f32.mrb[0].mxu0
        %v1596 = vadd.f32 %v1309, %v1595
        %v1597 = vpop.f32.mrb[0].mxu0
        %v1598 = vadd.f32 %v1313, %v1597
        %v1599 = vpop.f32.mrb[0].mxu0
        %v1600 = vadd.f32 %v1309, %v1599
        %v1601 = vpop.f32.mrb[0].mxu0
        %v1602 = vadd.f32 %v1313, %v1601
        %1603 = vmatprep.mubr.bf16.mxu0 0
        %1604 = vmatmul.mubr.bf16.gmra.mrb[0].mxu0 %v1263
        %v1605 = vpop.f32.mrb[0].mxu0
        %v1606 = vadd.f32 %v1309, %v1605
        %v1607 = vpop.f32.mrb[0].mxu0
        %v1608 = vadd.f32 %v1313, %v1607
        %v1609 = vpop.f32.mrb[0].mxu0
        %v1610 = vadd.f32 %v1309, %v1609
        %v1611 = vpop.f32.mrb[0].mxu0
        %v1612 = vadd.f32 %v1313, %v1611
        %1613 = vmatprep.mubr.bf16.mxu0 0
        %1614 = vmatmul.mubr.bf16.gmra.mrb[0].mxu0 %v1264
        %v1615 = vpop.f32.mrb[0].mxu0
        %v1616 = vadd.f32 %v1309, %v1615
        %v1617 = vpop.f32.mrb[0].mxu0
        %v1618 = vadd.f32 %v1313, %v1617
        %v1619 = vpop.f32.mrb[0].mxu0
        %v1620 = vadd.f32 %v1309, %v1619
        %v1621 = vpop.f32.mrb[0].mxu0
        %v1622 = vadd.f32 %v1313, %v1621
        %1623 = vdwg.mxu0
        %1624 = vst [vmem:[#allocation7] sm:$0xff] %v1513
        %1625 = vst [vmem:[#allocation7 + $0x8] sm:$0xff] %v1515
        %1626 = vst [vmem:[#allocation7 + $0x10] sm:$0xff] %v1586
        %1627 = vst [vmem:[#allocation7 + $0x18] sm:$0xff] %v1588
        %1628 = vst [vmem:[#allocation7 + $0x20] sm:$0xff] %v1517
        %1629 = vst [vmem:[#allocation7 + $0x28] sm:$0xff] %v1519
        %1630 = vst [vmem:[#allocation7 + $0x30] sm:$0xff] %v1590
        %1631 = vst [vmem:[#allocation7 + $0x38] sm:$0xff] %v1592
        %1632 = vst [vmem:[#allocation7 + $0x40] sm:$0xff] %v1523
        %1633 = vst [vmem:[#allocation7 + $0x48] sm:$0xff] %v1525
        %1634 = vst [vmem:[#allocation7 + $0x50] sm:$0xff] %v1596
        %1635 = vst [vmem:[#allocation7 + $0x58] sm:$0xff] %v1598
        %1636 = vst [vmem:[#allocation7 + $0x60] sm:$0xff] %v1527
        %1637 = vst [vmem:[#allocation7 + $0x68] sm:$0xff] %v1529
        %1638 = vst [vmem:[#allocation7 + $0x70] sm:$0xff] %v1600
        %1639 = vst [vmem:[#allocation7 + $0x78] sm:$0xff] %v1602
        %1640 = vst [vmem:[#allocation7 + $0x80] sm:$0xff] %v1533
        %1641 = vst [vmem:[#allocation7 + $0x88] sm:$0xff] %v1535
        %1642 = vst [vmem:[#allocation7 + $0x90] sm:$0xff] %v1606
        %1643 = vst [vmem:[#allocation7 + $0x98] sm:$0xff] %v1608
        %1644 = vst [vmem:[#allocation7 + $0xa0] sm:$0xff] %v1537
        %1645 = vst [vmem:[#allocation7 + $0xa8] sm:$0xff] %v1539
        %1646 = vst [vmem:[#allocation7 + $0xb0] sm:$0xff] %v1610
        %1647 = vst [vmem:[#allocation7 + $0xb8] sm:$0xff] %v1612
        %1648 = vst [vmem:[#allocation7 + $0xc0] sm:$0xff] %v1543
        %1649 = vst [vmem:[#allocation7 + $0xc8] sm:$0xff] %v1545
        %1650 = vst [vmem:[#allocation7 + $0xd0] sm:$0xff] %v1616
        %1651 = vst [vmem:[#allocation7 + $0xd8] sm:$0xff] %v1618
        %1652 = vst [vmem:[#allocation7 + $0xe0] sm:$0xff] %v1547
        %1653 = vst [vmem:[#allocation7 + $0xe8] sm:$0xff] %v1549
        %1654 = vst [vmem:[#allocation7 + $0xf0] sm:$0xff] %v1620
        %1655 = vst [vmem:[#allocation7 + $0xf8] sm:$0xff] %v1622
        %v1656 = vld [vmem:[#allocation4] sm:$0xff]
        %v1657 = vld [vmem:[#allocation4 + $0x8] sm:$0xff]
        %v1658 = vld [vmem:[#allocation5] sm:$0xff]
        %v1659 = vld [vmem:[#allocation5 + $0x8] sm:$0xff]
        %s1660 = smul.addr %s417, 8
        %s1661 = scalar_lea.vmem [#allocation7], %s1660
        %v1662 = vld [vmem:[%s1661] sm:$0xff]
        %v1663 = vld [vmem:[%s1661 + $0x8] sm:$0xff]
        %v1664 = vld [vmem:[%s1661 + $0x10] sm:$0xff]
        %v1665 = vld [vmem:[%s1661 + $0x18] sm:$0xff]
        %v1666 = vld [vmem:[%s1661 + $0x20] sm:$0xff]
        %v1667 = vld [vmem:[%s1661 + $0x28] sm:$0xff]
        %v1668 = vld [vmem:[%s1661 + $0x30] sm:$0xff]
        %v1669 = vld [vmem:[%s1661 + $0x38] sm:$0xff]
        %v1670 = vpack.c.bf16 %v1657, %v1656
        %v1703 = vunpack.c.l.b16 %v380
        %v1704 = vunpack.c.h.b16 %v380
        %v1705 = vunpack.c.l.b16 %v381
        %v1706 = vunpack.c.h.b16 %v381
        %v1707 = vunpack.c.l.b16 %v382
        %v1708 = vunpack.c.h.b16 %v382
        %v1709 = vunpack.c.l.b16 %v383
        %v1710 = vunpack.c.h.b16 %v383
        %v1711 = vunpack.c.l.b16 %v384
        %v1712 = vunpack.c.h.b16 %v384
        %v1713 = vunpack.c.l.b16 %v385
        %v1714 = vunpack.c.h.b16 %v385
        %v1715 = vunpack.c.l.b16 %v386
        %v1716 = vunpack.c.h.b16 %v386
        %v1717 = vunpack.c.l.b16 %v387
        %v1718 = vunpack.c.h.b16 %v387
        %v1719 = vunpack.c.l.b16 %v388
        %v1720 = vunpack.c.h.b16 %v388
        %v1721 = vunpack.c.l.b16 %v389
        %v1722 = vunpack.c.h.b16 %v389
        %v1723 = vunpack.c.l.b16 %v390
        %v1724 = vunpack.c.h.b16 %v390
        %v1725 = vunpack.c.l.b16 %v391
        %v1726 = vunpack.c.h.b16 %v391
        %v1727 = vunpack.c.l.b16 %v392
        %v1728 = vunpack.c.h.b16 %v392
        %v1729 = vunpack.c.l.b16 %v393
        %v1730 = vunpack.c.h.b16 %v393
        %v1731 = vunpack.c.l.b16 %v394
        %v1732 = vunpack.c.h.b16 %v394
        %v1733 = vunpack.c.l.b16 %v395
        %v1734 = vunpack.c.h.b16 %v395
        %v1735 = vunpack.c.l.b16 %v396
        %v1736 = vunpack.c.h.b16 %v396
        %v1737 = vunpack.c.l.b16 %v397
        %v1738 = vunpack.c.h.b16 %v397
        %v1739 = vunpack.c.l.b16 %v398
        %v1740 = vunpack.c.h.b16 %v398
        %v1741 = vunpack.c.l.b16 %v399
        %v1742 = vunpack.c.h.b16 %v399
        %v1743 = vunpack.c.l.b16 %v400
        %v1744 = vunpack.c.h.b16 %v400
        %v1745 = vunpack.c.l.b16 %v401
        %v1746 = vunpack.c.h.b16 %v401
        %v1747 = vunpack.c.l.b16 %v402
        %v1748 = vunpack.c.h.b16 %v402
        %v1749 = vunpack.c.l.b16 %v403
        %v1750 = vunpack.c.h.b16 %v403
        %v1751 = vunpack.c.l.b16 %v404
        %v1752 = vunpack.c.h.b16 %v404
        %v1753 = vunpack.c.l.b16 %v405
        %v1754 = vunpack.c.h.b16 %v405
        %v1755 = vunpack.c.l.b16 %v406
        %v1756 = vunpack.c.h.b16 %v406
        %v1757 = vunpack.c.l.b16 %v407
        %v1758 = vunpack.c.h.b16 %v407
        %v1759 = vunpack.c.l.b16 %v408
        %v1760 = vunpack.c.h.b16 %v408
        %v1761 = vunpack.c.l.b16 %v409
        %v1762 = vunpack.c.h.b16 %v409
        %v1763 = vunpack.c.l.b16 %v410
        %v1764 = vunpack.c.h.b16 %v410
        %v1765 = vunpack.c.l.b16 %v411
        %v1766 = vunpack.c.h.b16 %v411
        %v1767 = vpack.c.b16 %v1707, %v1703
        %v1768 = vpack.c.b16 %v1708, %v1704
        %v1769 = vpack.c.b16 %v1709, %v1705
        %v1770 = vpack.c.b16 %v1710, %v1706
        %v1771 = vpack.c.b16 %v1715, %v1711
        %v1772 = vpack.c.b16 %v1716, %v1712
        %v1773 = vpack.c.b16 %v1717, %v1713
        %v1774 = vpack.c.b16 %v1718, %v1714
        %v1775 = vpack.c.b16 %v1723, %v1719
        %v1776 = vpack.c.b16 %v1724, %v1720
        %v1777 = vpack.c.b16 %v1725, %v1721
        %v1778 = vpack.c.b16 %v1726, %v1722
        %v1779 = vpack.c.b16 %v1731, %v1727
        %v1780 = vpack.c.b16 %v1732, %v1728
        %v1781 = vpack.c.b16 %v1733, %v1729
        %v1782 = vpack.c.b16 %v1734, %v1730
        %v1783 = vpack.c.b16 %v1739, %v1735
        %v1784 = vpack.c.b16 %v1740, %v1736
        %v1785 = vpack.c.b16 %v1741, %v1737
        %v1786 = vpack.c.b16 %v1742, %v1738
        %v1787 = vpack.c.b16 %v1747, %v1743
        %v1788 = vpack.c.b16 %v1748, %v1744
        %v1789 = vpack.c.b16 %v1749, %v1745
        %v1790 = vpack.c.b16 %v1750, %v1746
        %v1791 = vpack.c.b16 %v1755, %v1751
        %v1792 = vpack.c.b16 %v1756, %v1752
        %v1793 = vpack.c.b16 %v1757, %v1753
        %v1794 = vpack.c.b16 %v1758, %v1754
        %v1795 = vpack.c.b16 %v1763, %v1759
        %v1796 = vpack.c.b16 %v1764, %v1760
        %v1797 = vpack.c.b16 %v1765, %v1761
        %v1798 = vpack.c.b16 %v1766, %v1762
        %1831 = vmatprep.subr.bf16.mxu0 %v1768
        %1832 = vmatpush1.bf16.msra.mxu0 %v1767
        %1833 = vmatprep.subr.bf16.mxu0 %v1772
        %1834 = vmatpush1.bf16.msra.mxu0 %v1771
        %1835 = vmatprep.subr.bf16.mxu0 %v1776
        %1836 = vmatpush1.bf16.msra.mxu0 %v1775
        %1837 = vmatprep.subr.bf16.mxu0 %v1780
        %1838 = vmatpush1.bf16.msra.mxu0 %v1779
        %1839 = vmatprep.subr.bf16.mxu0 %v1784
        %1840 = vmatpush1.bf16.msra.mxu0 %v1783
        %1841 = vmatprep.subr.bf16.mxu0 %v1788
        %1842 = vmatpush1.bf16.msra.mxu0 %v1787
        %1843 = vmatprep.subr.bf16.mxu0 %v1792
        %1844 = vmatpush1.bf16.msra.mxu0 %v1791
        %1845 = vmatprep.subr.bf16.mxu0 %v1796
        %1846 = vmatpush1.bf16.msra.mxu0 %v1795
        %1847 = vmatprep.subr.bf16.mxu0 0
        %1848 = vmatpush1.bf16.msra.mxu0 0
        %1849 = vmatprep.subr.bf16.mxu0 0
        %1850 = vmatpush1.bf16.msra.mxu0 0
        %1851 = vmatprep.subr.bf16.mxu0 0
        %1852 = vmatpush1.bf16.msra.mxu0 0
        %1853 = vmatprep.subr.bf16.mxu0 0
        %1854 = vmatpush1.bf16.msra.mxu0 0
        %1855 = vmatprep.subr.bf16.mxu0 0
        %1856 = vmatpush1.bf16.msra.mxu0 0
        %1857 = vmatprep.subr.bf16.mxu0 0
        %1858 = vmatpush1.bf16.msra.mxu0 0
        %1859 = vmatprep.subr.bf16.mxu0 0
        %1860 = vmatpush1.bf16.msra.mxu0 0
        %1861 = vmatprep.subr.bf16.mxu0 0
        %1862 = vmatpush1.bf16.msra.mxu0 0
        %1863 = vmatprep.mubr.bf16.mxu0 0
        %1864 = vmatmul.mubr.bf16.gmra.mrb[0].mxu0 %v1670
        %v1865 = vpop.f32.mrb[0].mxu0
        %v1866 = vadd.f32 0.0, %v1865
        %v1867 = vpop.f32.mrb[0].mxu0
        %v1868 = vadd.f32 0.0, %v1867
        %v1869 = vpop.f32.mrb[0].mxu0
        %v1870 = vadd.f32 0.0, %v1869
        %v1871 = vpop.f32.mrb[0].mxu0
        %v1872 = vadd.f32 0.0, %v1871
        %1873 = vdwg.mxu0
        %1874 = vmatprep.subr.bf16.mxu0 %v1770
        %1875 = vmatpush1.bf16.msra.mxu0 %v1769
        %1876 = vmatprep.subr.bf16.mxu0 %v1774
        %1877 = vmatpush1.bf16.msra.mxu0 %v1773
        %1878 = vmatprep.subr.bf16.mxu0 %v1778
        %1879 = vmatpush1.bf16.msra.mxu0 %v1777
        %1880 = vmatprep.subr.bf16.mxu0 %v1782
        %1881 = vmatpush1.bf16.msra.mxu0 %v1781
        %1882 = vmatprep.subr.bf16.mxu0 %v1786
        %1883 = vmatpush1.bf16.msra.mxu0 %v1785
        %1884 = vmatprep.subr.bf16.mxu0 %v1790
        %1885 = vmatpush1.bf16.msra.mxu0 %v1789
        %1886 = vmatprep.subr.bf16.mxu0 %v1794
        %1887 = vmatpush1.bf16.msra.mxu0 %v1793
        %1888 = vmatprep.subr.bf16.mxu0 %v1798
        %1889 = vmatpush1.bf16.msra.mxu0 %v1797
        %1890 = vmatprep.subr.bf16.mxu0 0
        %1891 = vmatpush1.bf16.msra.mxu0 0
        %1892 = vmatprep.subr.bf16.mxu0 0
        %1893 = vmatpush1.bf16.msra.mxu0 0
        %1894 = vmatprep.subr.bf16.mxu0 0
        %1895 = vmatpush1.bf16.msra.mxu0 0
        %1896 = vmatprep.subr.bf16.mxu0 0
        %1897 = vmatpush1.bf16.msra.mxu0 0
        %1898 = vmatprep.subr.bf16.mxu0 0
        %1899 = vmatpush1.bf16.msra.mxu0 0
        %1900 = vmatprep.subr.bf16.mxu0 0
        %1901 = vmatpush1.bf16.msra.mxu0 0
        %1902 = vmatprep.subr.bf16.mxu0 0
        %1903 = vmatpush1.bf16.msra.mxu0 0
        %1904 = vmatprep.subr.bf16.mxu0 0
        %1905 = vmatpush1.bf16.msra.mxu0 0
        %1906 = vmatprep.mubr.bf16.mxu0 0
        %1907 = vmatmul.mubr.bf16.gmra.mrb[0].mxu0 %v1670
        %v1908 = vpop.f32.mrb[0].mxu0
        %v1909 = vadd.f32 0.0, %v1908
        %v1910 = vpop.f32.mrb[0].mxu0
        %v1911 = vadd.f32 0.0, %v1910
        %v1912 = vpop.f32.mrb[0].mxu0
        %v1913 = vadd.f32 0.0, %v1912
        %v1914 = vpop.f32.mrb[0].mxu0
        %v1915 = vadd.f32 0.0, %v1914
        %1916 = vdwg.mxu0
        %v1917 = vadd.f32 %v1662, %v1866
        %v1918 = vadd.f32 %v1663, %v1868
        %v1919 = vadd.f32 %v1664, %v1909
        %v1920 = vadd.f32 %v1665, %v1911
        %v1921 = vadd.f32 %v1666, %v1870
        %v1922 = vadd.f32 %v1667, %v1872
        %v1923 = vadd.f32 %v1668, %v1913
        %v1924 = vadd.f32 %v1669, %v1915
        %v1925 = vxor.u32 %v1917, 2147483648
        %v1926 = vxor.u32 %v1918, 2147483648
        %v1927 = vxor.u32 %v1919, 2147483648
        %v1928 = vxor.u32 %v1920, 2147483648
        %v1929 = vxor.u32 %v1921, 2147483648
        %v1930 = vxor.u32 %v1922, 2147483648
        %v1931 = vxor.u32 %v1923, 2147483648
        %v1932 = vxor.u32 %v1924, 2147483648
        %v1933 = vmul.f32 %v1925, 1.442695
        %v1934 = vpow.pop %v1933
        %v1935 = vmul.f32 %v1926, 1.442695
        %v1936 = vpow.pop %v1935
        %v1937 = vmul.f32 %v1927, 1.442695
        %v1938 = vpow.pop %v1937
        %v1939 = vmul.f32 %v1928, 1.442695
        %v1940 = vpow.pop %v1939
        %v1941 = vmul.f32 %v1929, 1.442695
        %v1942 = vpow.pop %v1941
        %v1943 = vmul.f32 %v1930, 1.442695
        %v1944 = vpow.pop %v1943
        %v1945 = vmul.f32 %v1931, 1.442695
        %v1946 = vpow.pop %v1945
        %v1947 = vmul.f32 %v1932, 1.442695
        %v1948 = vpow.pop %v1947
        %v1949 = vadd.f32 %v1934, 1.0
        %v1950 = vadd.f32 %v1936, 1.0
        %v1951 = vadd.f32 %v1938, 1.0
        %v1952 = vadd.f32 %v1940, 1.0
        %v1953 = vadd.f32 %v1942, 1.0
        %v1954 = vadd.f32 %v1944, 1.0
        %v1955 = vadd.f32 %v1946, 1.0
        %v1956 = vadd.f32 %v1948, 1.0
        %v1957 = vrcp.pop %v1949
        %v1958 = vmul.f32 1.0, %v1957
        %v1959 = vrcp.pop %v1950
        %v1960 = vmul.f32 1.0, %v1959
        %v1961 = vrcp.pop %v1951
        %v1962 = vmul.f32 1.0, %v1961
        %v1963 = vrcp.pop %v1952
        %v1964 = vmul.f32 1.0, %v1963
        %v1965 = vrcp.pop %v1953
        %v1966 = vmul.f32 1.0, %v1965
        %v1967 = vrcp.pop %v1954
        %v1968 = vmul.f32 1.0, %v1967
        %v1969 = vrcp.pop %v1955
        %v1970 = vmul.f32 1.0, %v1969
        %v1971 = vrcp.pop %v1956
        %v1972 = vmul.f32 1.0, %v1971
        %v1973 = vmul.f32 %v1962, 2.0
        %v1974 = vmul.f32 %v1970, 2.0
        %v1975 = vsub.f32 %v1973, 1.0
        %v1976 = vsub.f32 %v1974, 1.0
        %v1977 = vmul.f32 %v1960, %v1658
        %v1978 = vmul.f32 %v1968, %v1659
        %v1979 = vmul.f32 %v1958, %v1975
        %v1980 = vmul.f32 %v1966, %v1976
        %v1981 = vadd.f32 %v1977, %v1979
        %v1982 = vadd.f32 %v1978, %v1980
        %v1983 = vtanh.pop %v1981
        %v1984 = vtanh.pop %v1982
        %v1985 = vmul.f32 %v1964, %v1983
        %v1986 = vmul.f32 %v1972, %v1984
        %s1987 = smul.addr %s747, 8
        %s1988 = scalar_lea.vmem [#allocation7], %s1987
        %v1989 = vld [vmem:[%s1988] sm:$0xff]
        %v1990 = vld [vmem:[%s1988 + $0x8] sm:$0xff]
        %v1991 = vld [vmem:[%s1988 + $0x10] sm:$0xff]
        %v1992 = vld [vmem:[%s1988 + $0x18] sm:$0xff]
        %v1993 = vld [vmem:[%s1988 + $0x20] sm:$0xff]
        %v1994 = vld [vmem:[%s1988 + $0x28] sm:$0xff]
        %v1995 = vld [vmem:[%s1988 + $0x30] sm:$0xff]
        %v1996 = vld [vmem:[%s1988 + $0x38] sm:$0xff]
        %v1997 = vpack.c.bf16 %v1986, %v1985
        %1998 = vmatprep.subr.bf16.mxu0 %v1768
        %1999 = vmatpush1.bf16.msra.mxu0 %v1767
        %2000 = vmatprep.subr.bf16.mxu0 %v1772
        %2001 = vmatpush1.bf16.msra.mxu0 %v1771
        %2002 = vmatprep.subr.bf16.mxu0 %v1776
        %2003 = vmatpush1.bf16.msra.mxu0 %v1775
        %2004 = vmatprep.subr.bf16.mxu0 %v1780
        %2005 = vmatpush1.bf16.msra.mxu0 %v1779
        %2006 = vmatprep.subr.bf16.mxu0 %v1784
        %2007 = vmatpush1.bf16.msra.mxu0 %v1783
        %2008 = vmatprep.subr.bf16.mxu0 %v1788
        %2009 = vmatpush1.bf16.msra.mxu0 %v1787
        %2010 = vmatprep.subr.bf16.mxu0 %v1792
        %2011 = vmatpush1.bf16.msra.mxu0 %v1791
        %2012 = vmatprep.subr.bf16.mxu0 %v1796
        %2013 = vmatpush1.bf16.msra.mxu0 %v1795
        %2014 = vmatprep.subr.bf16.mxu0 0
        %2015 = vmatpush1.bf16.msra.mxu0 0
        %2016 = vmatprep.subr.bf16.mxu0 0
        %2017 = vmatpush1.bf16.msra.mxu0 0
        %2018 = vmatprep.subr.bf16.mxu0 0
        %2019 = vmatpush1.bf16.msra.mxu0 0
        %2020 = vmatprep.subr.bf16.mxu0 0
        %2021 = vmatpush1.bf16.msra.mxu0 0
        %2022 = vmatprep.subr.bf16.mxu0 0
        %2023 = vmatpush1.bf16.msra.mxu0 0
        %2024 = vmatprep.subr.bf16.mxu0 0
        %2025 = vmatpush1.bf16.msra.mxu0 0
        %2026 = vmatprep.subr.bf16.mxu0 0
        %2027 = vmatpush1.bf16.msra.mxu0 0
        %2028 = vmatprep.subr.bf16.mxu0 0
        %2029 = vmatpush1.bf16.msra.mxu0 0
        %2030 = vmatprep.mubr.bf16.mxu0 0
        %2031 = vmatmul.mubr.bf16.gmra.mrb[0].mxu0 %v1997
        %v2032 = vpop.f32.mrb[0].mxu0
        %v2033 = vadd.f32 0.0, %v2032
        %v2034 = vpop.f32.mrb[0].mxu0
        %v2035 = vadd.f32 0.0, %v2034
        %v2036 = vpop.f32.mrb[0].mxu0
        %v2037 = vadd.f32 0.0, %v2036
        %v2038 = vpop.f32.mrb[0].mxu0
        %v2039 = vadd.f32 0.0, %v2038
        %2040 = vdwg.mxu0
        %2041 = vmatprep.subr.bf16.mxu0 %v1770
        %2042 = vmatpush1.bf16.msra.mxu0 %v1769
        %2043 = vmatprep.subr.bf16.mxu0 %v1774
        %2044 = vmatpush1.bf16.msra.mxu0 %v1773
        %2045 = vmatprep.subr.bf16.mxu0 %v1778
        %2046 = vmatpush1.bf16.msra.mxu0 %v1777
        %2047 = vmatprep.subr.bf16.mxu0 %v1782
        %2048 = vmatpush1.bf16.msra.mxu0 %v1781
        %2049 = vmatprep.subr.bf16.mxu0 %v1786
        %2050 = vmatpush1.bf16.msra.mxu0 %v1785
        %2051 = vmatprep.subr.bf16.mxu0 %v1790
        %2052 = vmatpush1.bf16.msra.mxu0 %v1789
        %2053 = vmatprep.subr.bf16.mxu0 %v1794
        %2054 = vmatpush1.bf16.msra.mxu0 %v1793
        %2055 = vmatprep.subr.bf16.mxu0 %v1798
        %2056 = vmatpush1.bf16.msra.mxu0 %v1797
        %2057 = vmatprep.subr.bf16.mxu0 0
        %2058 = vmatpush1.bf16.msra.mxu0 0
        %2059 = vmatprep.subr.bf16.mxu0 0
        %2060 = vmatpush1.bf16.msra.mxu0 0
        %2061 = vmatprep.subr.bf16.mxu0 0
        %2062 = vmatpush1.bf16.msra.mxu0 0
        %2063 = vmatprep.subr.bf16.mxu0 0
        %2064 = vmatpush1.bf16.msra.mxu0 0
        %2065 = vmatprep.subr.bf16.mxu0 0
        %2066 = vmatpush1.bf16.msra.mxu0 0
        %2067 = vmatprep.subr.bf16.mxu0 0
        %2068 = vmatpush1.bf16.msra.mxu0 0
        %2069 = vmatprep.subr.bf16.mxu0 0
        %2070 = vmatpush1.bf16.msra.mxu0 0
        %2071 = vmatprep.subr.bf16.mxu0 0
        %2072 = vmatpush1.bf16.msra.mxu0 0
        %2073 = vmatprep.mubr.bf16.mxu0 0
        %2074 = vmatmul.mubr.bf16.gmra.mrb[0].mxu0 %v1997
        %v2075 = vpop.f32.mrb[0].mxu0
        %v2076 = vadd.f32 0.0, %v2075
        %v2077 = vpop.f32.mrb[0].mxu0
        %v2078 = vadd.f32 0.0, %v2077
        %v2079 = vpop.f32.mrb[0].mxu0
        %v2080 = vadd.f32 0.0, %v2079
        %v2081 = vpop.f32.mrb[0].mxu0
        %v2082 = vadd.f32 0.0, %v2081
        %2083 = vdwg.mxu0
        %v2084 = vadd.f32 %v1989, %v2033
        %v2085 = vadd.f32 %v1990, %v2035
        %v2086 = vadd.f32 %v1991, %v2076
        %v2087 = vadd.f32 %v1992, %v2078
        %v2088 = vadd.f32 %v1993, %v2037
        %v2089 = vadd.f32 %v1994, %v2039
        %v2090 = vadd.f32 %v1995, %v2080
        %v2091 = vadd.f32 %v1996, %v2082
        %v2092 = vxor.u32 %v2084, 2147483648
        %v2093 = vxor.u32 %v2085, 2147483648
        %v2094 = vxor.u32 %v2086, 2147483648
        %v2095 = vxor.u32 %v2087, 2147483648
        %v2096 = vxor.u32 %v2088, 2147483648
        %v2097 = vxor.u32 %v2089, 2147483648
        %v2098 = vxor.u32 %v2090, 2147483648
        %v2099 = vxor.u32 %v2091, 2147483648
        %v2100 = vmul.f32 %v2092, 1.442695
        %v2101 = vpow.pop %v2100
        %v2102 = vmul.f32 %v2093, 1.442695
        %v2103 = vpow.pop %v2102
        %v2104 = vmul.f32 %v2094, 1.442695
        %v2105 = vpow.pop %v2104
        %v2106 = vmul.f32 %v2095, 1.442695
        %v2107 = vpow.pop %v2106
        %v2108 = vmul.f32 %v2096, 1.442695
        %v2109 = vpow.pop %v2108
        %v2110 = vmul.f32 %v2097, 1.442695
        %v2111 = vpow.pop %v2110
        %v2112 = vmul.f32 %v2098, 1.442695
        %v2113 = vpow.pop %v2112
        %v2114 = vmul.f32 %v2099, 1.442695
        %v2115 = vpow.pop %v2114
        %v2116 = vadd.f32 %v2101, 1.0
        %v2117 = vadd.f32 %v2103, 1.0
        %v2118 = vadd.f32 %v2105, 1.0
        %v2119 = vadd.f32 %v2107, 1.0
        %v2120 = vadd.f32 %v2109, 1.0
        %v2121 = vadd.f32 %v2111, 1.0
        %v2122 = vadd.f32 %v2113, 1.0
        %v2123 = vadd.f32 %v2115, 1.0
        %v2124 = vrcp.pop %v2116
        %v2125 = vmul.f32 1.0, %v2124
        %v2126 = vrcp.pop %v2117
        %v2127 = vmul.f32 1.0, %v2126
        %v2128 = vrcp.pop %v2118
        %v2129 = vmul.f32 1.0, %v2128
        %v2130 = vrcp.pop %v2119
        %v2131 = vmul.f32 1.0, %v2130
        %v2132 = vrcp.pop %v2120
        %v2133 = vmul.f32 1.0, %v2132
        %v2134 = vrcp.pop %v2121
        %v2135 = vmul.f32 1.0, %v2134
        %v2136 = vrcp.pop %v2122
        %v2137 = vmul.f32 1.0, %v2136
        %v2138 = vrcp.pop %v2123
        %v2139 = vmul.f32 1.0, %v2138
        %v2140 = vmul.f32 %v2129, 2.0
        %v2141 = vmul.f32 %v2137, 2.0
        %v2142 = vsub.f32 %v2140, 1.0
        %v2143 = vsub.f32 %v2141, 1.0
        %v2144 = vmul.f32 %v2127, %v1981
        %v2145 = vmul.f32 %v2135, %v1982
        %v2146 = vmul.f32 %v2125, %v2142
        %v2147 = vmul.f32 %v2133, %v2143
        %v2148 = vadd.f32 %v2144, %v2146
        %v2149 = vadd.f32 %v2145, %v2147
        %v2150 = vtanh.pop %v2148
        %v2151 = vtanh.pop %v2149
        %v2152 = vmul.f32 %v2131, %v2150
        %v2153 = vmul.f32 %v2139, %v2151
        %s2154 = smul.addr %s917, 8
        %s2155 = scalar_lea.vmem [#allocation7], %s2154
        %v2156 = vld [vmem:[%s2155] sm:$0xff]
        %v2157 = vld [vmem:[%s2155 + $0x8] sm:$0xff]
        %v2158 = vld [vmem:[%s2155 + $0x10] sm:$0xff]
        %v2159 = vld [vmem:[%s2155 + $0x18] sm:$0xff]
        %v2160 = vld [vmem:[%s2155 + $0x20] sm:$0xff]
        %v2161 = vld [vmem:[%s2155 + $0x28] sm:$0xff]
        %v2162 = vld [vmem:[%s2155 + $0x30] sm:$0xff]
        %v2163 = vld [vmem:[%s2155 + $0x38] sm:$0xff]
        %v2164 = vpack.c.bf16 %v2153, %v2152
        %2165 = vmatprep.subr.bf16.mxu0 %v1768
        %2166 = vmatpush1.bf16.msra.mxu0 %v1767
        %2167 = vmatprep.subr.bf16.mxu0 %v1772
        %2168 = vmatpush1.bf16.msra.mxu0 %v1771
        %2169 = vmatprep.subr.bf16.mxu0 %v1776
        %2170 = vmatpush1.bf16.msra.mxu0 %v1775
        %2171 = vmatprep.subr.bf16.mxu0 %v1780
        %2172 = vmatpush1.bf16.msra.mxu0 %v1779
        %2173 = vmatprep.subr.bf16.mxu0 %v1784
        %2174 = vmatpush1.bf16.msra.mxu0 %v1783
        %2175 = vmatprep.subr.bf16.mxu0 %v1788
        %2176 = vmatpush1.bf16.msra.mxu0 %v1787
        %2177 = vmatprep.subr.bf16.mxu0 %v1792
        %2178 = vmatpush1.bf16.msra.mxu0 %v1791
        %2179 = vmatprep.subr.bf16.mxu0 %v1796
        %2180 = vmatpush1.bf16.msra.mxu0 %v1795
        %2181 = vmatprep.subr.bf16.mxu0 0
        %2182 = vmatpush1.bf16.msra.mxu0 0
        %2183 = vmatprep.subr.bf16.mxu0 0
        %2184 = vmatpush1.bf16.msra.mxu0 0
        %2185 = vmatprep.subr.bf16.mxu0 0
        %2186 = vmatpush1.bf16.msra.mxu0 0
        %2187 = vmatprep.subr.bf16.mxu0 0
        %2188 = vmatpush1.bf16.msra.mxu0 0
        %2189 = vmatprep.subr.bf16.mxu0 0
        %2190 = vmatpush1.bf16.msra.mxu0 0
        %2191 = vmatprep.subr.bf16.mxu0 0
        %2192 = vmatpush1.bf16.msra.mxu0 0
        %2193 = vmatprep.subr.bf16.mxu0 0
        %2194 = vmatpush1.bf16.msra.mxu0 0
        %2195 = vmatprep.subr.bf16.mxu0 0
        %2196 = vmatpush1.bf16.msra.mxu0 0
        %2197 = vmatprep.mubr.bf16.mxu0 0
        %2198 = vmatmul.mubr.bf16.gmra.mrb[0].mxu0 %v2164
        %v2199 = vpop.f32.mrb[0].mxu0
        %v2200 = vadd.f32 0.0, %v2199
        %v2201 = vpop.f32.mrb[0].mxu0
        %v2202 = vadd.f32 0.0, %v2201
        %v2203 = vpop.f32.mrb[0].mxu0
        %v2204 = vadd.f32 0.0, %v2203
        %v2205 = vpop.f32.mrb[0].mxu0
        %v2206 = vadd.f32 0.0, %v2205
        %2207 = vdwg.mxu0
        %2208 = vmatprep.subr.bf16.mxu0 %v1770
        %2209 = vmatpush1.bf16.msra.mxu0 %v1769
        %2210 = vmatprep.subr.bf16.mxu0 %v1774
        %2211 = vmatpush1.bf16.msra.mxu0 %v1773
        %2212 = vmatprep.subr.bf16.mxu0 %v1778
        %2213 = vmatpush1.bf16.msra.mxu0 %v1777
        %2214 = vmatprep.subr.bf16.mxu0 %v1782
        %2215 = vmatpush1.bf16.msra.mxu0 %v1781
        %2216 = vmatprep.subr.bf16.mxu0 %v1786
        %2217 = vmatpush1.bf16.msra.mxu0 %v1785
        %2218 = vmatprep.subr.bf16.mxu0 %v1790
        %2219 = vmatpush1.bf16.msra.mxu0 %v1789
        %2220 = vmatprep.subr.bf16.mxu0 %v1794
        %2221 = vmatpush1.bf16.msra.mxu0 %v1793
        %2222 = vmatprep.subr.bf16.mxu0 %v1798
        %2223 = vmatpush1.bf16.msra.mxu0 %v1797
        %2224 = vmatprep.subr.bf16.mxu0 0
        %2225 = vmatpush1.bf16.msra.mxu0 0
        %2226 = vmatprep.subr.bf16.mxu0 0
        %2227 = vmatpush1.bf16.msra.mxu0 0
        %2228 = vmatprep.subr.bf16.mxu0 0
        %2229 = vmatpush1.bf16.msra.mxu0 0
        %2230 = vmatprep.subr.bf16.mxu0 0
        %2231 = vmatpush1.bf16.msra.mxu0 0
        %2232 = vmatprep.subr.bf16.mxu0 0
        %2233 = vmatpush1.bf16.msra.mxu0 0
        %2234 = vmatprep.subr.bf16.mxu0 0
        %2235 = vmatpush1.bf16.msra.mxu0 0
        %2236 = vmatprep.subr.bf16.mxu0 0
        %2237 = vmatpush1.bf16.msra.mxu0 0
        %2238 = vmatprep.subr.bf16.mxu0 0
        %2239 = vmatpush1.bf16.msra.mxu0 0
        %2240 = vmatprep.mubr.bf16.mxu0 0
        %2241 = vmatmul.mubr.bf16.gmra.mrb[0].mxu0 %v2164
        %v2242 = vpop.f32.mrb[0].mxu0
        %v2243 = vadd.f32 0.0, %v2242
        %v2244 = vpop.f32.mrb[0].mxu0
        %v2245 = vadd.f32 0.0, %v2244
        %v2246 = vpop.f32.mrb[0].mxu0
        %v2247 = vadd.f32 0.0, %v2246
        %v2248 = vpop.f32.mrb[0].mxu0
        %v2249 = vadd.f32 0.0, %v2248
        %2250 = vdwg.mxu0
        %v2251 = vadd.f32 %v2156, %v2200
        %v2252 = vadd.f32 %v2157, %v2202
        %v2253 = vadd.f32 %v2158, %v2243
        %v2254 = vadd.f32 %v2159, %v2245
        %v2255 = vadd.f32 %v2160, %v2204
        %v2256 = vadd.f32 %v2161, %v2206
        %v2257 = vadd.f32 %v2162, %v2247
        %v2258 = vadd.f32 %v2163, %v2249
        %v2259 = vxor.u32 %v2251, 2147483648
        %v2260 = vxor.u32 %v2252, 2147483648
        %v2261 = vxor.u32 %v2253, 2147483648
        %v2262 = vxor.u32 %v2254, 2147483648
        %v2263 = vxor.u32 %v2255, 2147483648
        %v2264 = vxor.u32 %v2256, 2147483648
        %v2265 = vxor.u32 %v2257, 2147483648
        %v2266 = vxor.u32 %v2258, 2147483648
        %v2267 = vmul.f32 %v2259, 1.442695
        %v2268 = vpow.pop %v2267
        %v2269 = vmul.f32 %v2260, 1.442695
        %v2270 = vpow.pop %v2269
        %v2271 = vmul.f32 %v2261, 1.442695
        %v2272 = vpow.pop %v2271
        %v2273 = vmul.f32 %v2262, 1.442695
        %v2274 = vpow.pop %v2273
        %v2275 = vmul.f32 %v2263, 1.442695
        %v2276 = vpow.pop %v2275
        %v2277 = vmul.f32 %v2264, 1.442695
        %v2278 = vpow.pop %v2277
        %v2279 = vmul.f32 %v2265, 1.442695
        %v2280 = vpow.pop %v2279
        %v2281 = vmul.f32 %v2266, 1.442695
        %v2282 = vpow.pop %v2281
        %v2283 = vadd.f32 %v2268, 1.0
        %v2284 = vadd.f32 %v2270, 1.0
        %v2285 = vadd.f32 %v2272, 1.0
        %v2286 = vadd.f32 %v2274, 1.0
        %v2287 = vadd.f32 %v2276, 1.0
        %v2288 = vadd.f32 %v2278, 1.0
        %v2289 = vadd.f32 %v2280, 1.0
        %v2290 = vadd.f32 %v2282, 1.0
        %v2291 = vrcp.pop %v2283
        %v2292 = vmul.f32 1.0, %v2291
        %v2293 = vrcp.pop %v2284
        %v2294 = vmul.f32 1.0, %v2293
        %v2295 = vrcp.pop %v2285
        %v2296 = vmul.f32 1.0, %v2295
        %v2297 = vrcp.pop %v2286
        %v2298 = vmul.f32 1.0, %v2297
        %v2299 = vrcp.pop %v2287
        %v2300 = vmul.f32 1.0, %v2299
        %v2301 = vrcp.pop %v2288
        %v2302 = vmul.f32 1.0, %v2301
        %v2303 = vrcp.pop %v2289
        %v2304 = vmul.f32 1.0, %v2303
        %v2305 = vrcp.pop %v2290
        %v2306 = vmul.f32 1.0, %v2305
        %v2307 = vmul.f32 %v2296, 2.0
        %v2308 = vmul.f32 %v2304, 2.0
        %v2309 = vsub.f32 %v2307, 1.0
        %v2310 = vsub.f32 %v2308, 1.0
        %v2311 = vmul.f32 %v2294, %v2148
        %v2312 = vmul.f32 %v2302, %v2149
        %v2313 = vmul.f32 %v2292, %v2309
        %v2314 = vmul.f32 %v2300, %v2310
        %v2315 = vadd.f32 %v2311, %v2313
        %v2316 = vadd.f32 %v2312, %v2314
        %v2317 = vtanh.pop %v2315
        %v2318 = vtanh.pop %v2316
        %v2319 = vmul.f32 %v2298, %v2317
        %v2320 = vmul.f32 %v2306, %v2318
        %s2321 = smul.addr %s1087, 8
        %s2322 = scalar_lea.vmem [#allocation7], %s2321
        %v2323 = vld [vmem:[%s2322] sm:$0xff]
        %v2324 = vld [vmem:[%s2322 + $0x8] sm:$0xff]
        %v2325 = vld [vmem:[%s2322 + $0x10] sm:$0xff]
        %v2326 = vld [vmem:[%s2322 + $0x18] sm:$0xff]
        %v2327 = vld [vmem:[%s2322 + $0x20] sm:$0xff]
        %v2328 = vld [vmem:[%s2322 + $0x28] sm:$0xff]
        %v2329 = vld [vmem:[%s2322 + $0x30] sm:$0xff]
        %v2330 = vld [vmem:[%s2322 + $0x38] sm:$0xff]
        %v2331 = vpack.c.bf16 %v2320, %v2319
        %2332 = vmatprep.subr.bf16.mxu0 %v1768
        %2333 = vmatpush1.bf16.msra.mxu0 %v1767
        %2334 = vmatprep.subr.bf16.mxu0 %v1772
        %2335 = vmatpush1.bf16.msra.mxu0 %v1771
        %2336 = vmatprep.subr.bf16.mxu0 %v1776
        %2337 = vmatpush1.bf16.msra.mxu0 %v1775
        %2338 = vmatprep.subr.bf16.mxu0 %v1780
        %2339 = vmatpush1.bf16.msra.mxu0 %v1779
        %2340 = vmatprep.subr.bf16.mxu0 %v1784
        %2341 = vmatpush1.bf16.msra.mxu0 %v1783
        %2342 = vmatprep.subr.bf16.mxu0 %v1788
        %2343 = vmatpush1.bf16.msra.mxu0 %v1787
        %2344 = vmatprep.subr.bf16.mxu0 %v1792
        %2345 = vmatpush1.bf16.msra.mxu0 %v1791
        %2346 = vmatprep.subr.bf16.mxu0 %v1796
        %2347 = vmatpush1.bf16.msra.mxu0 %v1795
        %2348 = vmatprep.subr.bf16.mxu0 0
        %2349 = vmatpush1.bf16.msra.mxu0 0
        %2350 = vmatprep.subr.bf16.mxu0 0
        %2351 = vmatpush1.bf16.msra.mxu0 0
        %2352 = vmatprep.subr.bf16.mxu0 0
        %2353 = vmatpush1.bf16.msra.mxu0 0
        %2354 = vmatprep.subr.bf16.mxu0 0
        %2355 = vmatpush1.bf16.msra.mxu0 0
        %2356 = vmatprep.subr.bf16.mxu0 0
        %2357 = vmatpush1.bf16.msra.mxu0 0
        %2358 = vmatprep.subr.bf16.mxu0 0
        %2359 = vmatpush1.bf16.msra.mxu0 0
        %2360 = vmatprep.subr.bf16.mxu0 0
        %2361 = vmatpush1.bf16.msra.mxu0 0
        %2362 = vmatprep.subr.bf16.mxu0 0
        %2363 = vmatpush1.bf16.msra.mxu0 0
        %2364 = vmatprep.mubr.bf16.mxu0 0
        %2365 = vmatmul.mubr.bf16.gmra.mrb[0].mxu0 %v2331
        %v2366 = vpop.f32.mrb[0].mxu0
        %v2367 = vadd.f32 0.0, %v2366
        %v2368 = vpop.f32.mrb[0].mxu0
        %v2369 = vadd.f32 0.0, %v2368
        %v2370 = vpop.f32.mrb[0].mxu0
        %v2371 = vadd.f32 0.0, %v2370
        %v2372 = vpop.f32.mrb[0].mxu0
        %v2373 = vadd.f32 0.0, %v2372
        %2374 = vdwg.mxu0
        %2375 = vmatprep.subr.bf16.mxu0 %v1770
        %2376 = vmatpush1.bf16.msra.mxu0 %v1769
        %2377 = vmatprep.subr.bf16.mxu0 %v1774
        %2378 = vmatpush1.bf16.msra.mxu0 %v1773
        %2379 = vmatprep.subr.bf16.mxu0 %v1778
        %2380 = vmatpush1.bf16.msra.mxu0 %v1777
        %2381 = vmatprep.subr.bf16.mxu0 %v1782
        %2382 = vmatpush1.bf16.msra.mxu0 %v1781
        %2383 = vmatprep.subr.bf16.mxu0 %v1786
        %2384 = vmatpush1.bf16.msra.mxu0 %v1785
        %2385 = vmatprep.subr.bf16.mxu0 %v1790
        %2386 = vmatpush1.bf16.msra.mxu0 %v1789
        %2387 = vmatprep.subr.bf16.mxu0 %v1794
        %2388 = vmatpush1.bf16.msra.mxu0 %v1793
        %2389 = vmatprep.subr.bf16.mxu0 %v1798
        %2390 = vmatpush1.bf16.msra.mxu0 %v1797
        %2391 = vmatprep.subr.bf16.mxu0 0
        %2392 = vmatpush1.bf16.msra.mxu0 0
        %2393 = vmatprep.subr.bf16.mxu0 0
        %2394 = vmatpush1.bf16.msra.mxu0 0
        %2395 = vmatprep.subr.bf16.mxu0 0
        %2396 = vmatpush1.bf16.msra.mxu0 0
        %2397 = vmatprep.subr.bf16.mxu0 0
        %2398 = vmatpush1.bf16.msra.mxu0 0
        %2399 = vmatprep.subr.bf16.mxu0 0
        %2400 = vmatpush1.bf16.msra.mxu0 0
        %2401 = vmatprep.subr.bf16.mxu0 0
        %2402 = vmatpush1.bf16.msra.mxu0 0
        %2403 = vmatprep.subr.bf16.mxu0 0
        %2404 = vmatpush1.bf16.msra.mxu0 0
        %2405 = vmatprep.subr.bf16.mxu0 0
        %2406 = vmatpush1.bf16.msra.mxu0 0
        %2407 = vmatprep.mubr.bf16.mxu0 0
        %2408 = vmatmul.mubr.bf16.gmra.mrb[0].mxu0 %v2331
        %v2409 = vpop.f32.mrb[0].mxu0
        %v2410 = vadd.f32 0.0, %v2409
        %v2411 = vpop.f32.mrb[0].mxu0
        %v2412 = vadd.f32 0.0, %v2411
        %v2413 = vpop.f32.mrb[0].mxu0
        %v2414 = vadd.f32 0.0, %v2413
        %v2415 = vpop.f32.mrb[0].mxu0
        %v2416 = vadd.f32 0.0, %v2415
        %2417 = vdwg.mxu0
        %v2418 = vadd.f32 %v2323, %v2367
        %v2419 = vadd.f32 %v2324, %v2369
        %v2420 = vadd.f32 %v2325, %v2410
        %v2421 = vadd.f32 %v2326, %v2412
        %v2422 = vadd.f32 %v2327, %v2371
        %v2423 = vadd.f32 %v2328, %v2373
        %v2424 = vadd.f32 %v2329, %v2414
        %v2425 = vadd.f32 %v2330, %v2416
        %v2426 = vxor.u32 %v2418, 2147483648
        %v2427 = vxor.u32 %v2419, 2147483648
        %v2428 = vxor.u32 %v2420, 2147483648
        %v2429 = vxor.u32 %v2421, 2147483648
        %v2430 = vxor.u32 %v2422, 2147483648
        %v2431 = vxor.u32 %v2423, 2147483648
        %v2432 = vxor.u32 %v2424, 2147483648
        %v2433 = vxor.u32 %v2425, 2147483648
        %v2434 = vmul.f32 %v2426, 1.442695
        %v2435 = vpow.pop %v2434
        %v2436 = vmul.f32 %v2427, 1.442695
        %v2437 = vpow.pop %v2436
        %v2438 = vmul.f32 %v2428, 1.442695
        %v2439 = vpow.pop %v2438
        %v2440 = vmul.f32 %v2429, 1.442695
        %v2441 = vpow.pop %v2440
        %v2442 = vmul.f32 %v2430, 1.442695
        %v2443 = vpow.pop %v2442
        %v2444 = vmul.f32 %v2431, 1.442695
        %v2445 = vpow.pop %v2444
        %v2446 = vmul.f32 %v2432, 1.442695
        %v2447 = vpow.pop %v2446
        %v2448 = vmul.f32 %v2433, 1.442695
        %v2449 = vpow.pop %v2448
        %v2450 = vadd.f32 %v2435, 1.0
        %v2451 = vadd.f32 %v2437, 1.0
        %v2452 = vadd.f32 %v2439, 1.0
        %v2453 = vadd.f32 %v2441, 1.0
        %v2454 = vadd.f32 %v2443, 1.0
        %v2455 = vadd.f32 %v2445, 1.0
        %v2456 = vadd.f32 %v2447, 1.0
        %v2457 = vadd.f32 %v2449, 1.0
        %v2458 = vrcp.pop %v2450
        %v2459 = vmul.f32 1.0, %v2458
        %v2460 = vrcp.pop %v2451
        %v2461 = vmul.f32 1.0, %v2460
        %v2462 = vrcp.pop %v2452
        %v2463 = vmul.f32 1.0, %v2462
        %v2464 = vrcp.pop %v2453
        %v2465 = vmul.f32 1.0, %v2464
        %v2466 = vrcp.pop %v2454
        %v2467 = vmul.f32 1.0, %v2466
        %v2468 = vrcp.pop %v2455
        %v2469 = vmul.f32 1.0, %v2468
        %v2470 = vrcp.pop %v2456
        %v2471 = vmul.f32 1.0, %v2470
        %v2472 = vrcp.pop %v2457
        %v2473 = vmul.f32 1.0, %v2472
        %v2474 = vmul.f32 %v2463, 2.0
        %v2475 = vmul.f32 %v2471, 2.0
        %v2476 = vsub.f32 %v2474, 1.0
        %v2477 = vsub.f32 %v2475, 1.0
        %v2478 = vmul.f32 %v2461, %v2315
        %v2479 = vmul.f32 %v2469, %v2316
        %v2480 = vmul.f32 %v2459, %v2476
        %v2481 = vmul.f32 %v2467, %v2477
        %v2482 = vadd.f32 %v2478, %v2480
        %v2483 = vadd.f32 %v2479, %v2481
        %v2484 = vtanh.pop %v2482
        %v2485 = vtanh.pop %v2483
        %v2486 = vmul.f32 %v2465, %v2484
        %v2487 = vmul.f32 %v2473, %v2485
        %2488 = vst [vmem:[#allocation4] sm:$0xff] %v2486
        %2489 = vst [vmem:[#allocation4 + $0x8] sm:$0xff] %v2487
        %2490 = vst [vmem:[#allocation5] sm:$0xff] %v2482
        %2491 = vst [vmem:[#allocation5 + $0x8] sm:$0xff] %v2483
        %p2492 = scmp.eq.s32.totalorder %s25, 1
        // Predicated region
        $region69: #{tpu_custom_call.1} parent=47 // pred_check
          %p2493 = pneg %p2492
        $region70: #{tpu_custom_call.1} parent=47 // pred_check_branch
          %2495 = sbr.rel (%p2493) target = $region72
        $region71: #{tpu_custom_call.1} parent=47 // pred_region
          %v2496 = vld [vmem:[%s5] sm:$0x1]
          %v2498 = vlaneseq
          %v2499 = vshrl.u32 %v2498, 7
          %v2500 = vsub.s32 0, %v2499
          %v2501 = vrot.slane %v2496, %v2500
          %v2503 = vmul.f32 %v2486, %v2501
          %v2504 = vmul.f32 %v2487, %v2501
          %2505 = vadd.xlane.f32.xlu0 %v2503
          %v2506 = vpop.xlane.xlu0 %2505
          %2507 = vadd.xlane.f32.xlu0 %v2504
          %v2508 = vpop.xlane.xlu0 %2507
          %v2509 = vld [vmem:[#allocation8] sm:$0x1]
          %v2511 = vlaneseq
          %v2512 = vshrl.u32 %v2511, 7
          %v2513 = vsub.s32 0, %v2512
          %v2514 = vrot.slane %v2509, %v2513
          %v2516 = vadd.f32 %v2506, %v2514
          %v2517 = vadd.f32 %v2508, %v2514
          %vm2518 = vcmask 7168
          %2519 = vst.msk [vmem:[%s7] sm:$0xff] %vm2518, %v2516
          %2520 = vst.msk [vmem:[%s7 + $0x8] sm:$0xff] %vm2518, %v2517
        $region72: #{tpu_custom_call.1} parent=47 // pred_fallthru
          _
        // Predicated region
        $region73: #{tpu_custom_call.1} parent=47 // pred_check
          %p2521 = pneg %p190
        $region74: #{tpu_custom_call.1} parent=47 // pred_check_branch
          %2523 = sbr.rel (%p2521) target = $region76
        $region75: #{tpu_custom_call.1} parent=47 // pred_region
          _
        $region76: #{tpu_custom_call.1} parent=47 // pred_fallthru
          _
        // Predicated region
        $region77: #{tpu_custom_call.1} parent=47 // pred_check
          %p2524 = pneg %p190
        $region78: #{tpu_custom_call.1} parent=47 // pred_check_branch
          %2526 = sbr.rel (%p2524) target = $region80
        $region79: #{tpu_custom_call.1} parent=47 // pred_region
          _
        $region80: #{tpu_custom_call.1} parent=47 // pred_fallthru
          _
      $region48: #{tpu_custom_call.1} parent=5 // pred_fallthru
        _
      %p2527 = scmp.le.s32.totalorder 2, %s20
      // Predicated region
      $region81: #{tpu_custom_call.1} parent=5 // pred_check
        %p2528 = pneg %p2527
      $region82: #{tpu_custom_call.1} parent=5 // pred_check_branch
        %2530 = sbr.rel (%p2528) target = $region84
      $region83: #{tpu_custom_call.1} parent=5 // pred_region
        %s2531 = ssub.s32 %s20, 2
      $region84: #{tpu_custom_call.1} parent=5 // pred_fallthru
        _
    $region6: #{tpu_custom_call.1} parent=1 // loop_footer
      %s24 = sadd.s32 1, %s20
    $region7: #{tpu_custom_call.1} parent=1 // loop_footer_branch
      %19 = sbr.rel target = $region3
    $region8: #{tpu_custom_call.1} parent=1 // loop_exit
      _
    %2532 = vsyncpa [#allocation10], 1
    %s2533 = scalar_lea.sflag [#allocation10], 1
    %2534 = vsyncpa %s2533, 1
    %2535 = vsyncpa [#allocation12], 1
    %2536 = vsyncpa [#allocation15], 1

</llo_original>
